<compile_context>
chip_gen: v5e
topology: v5e:2x2
jax: 0.10.0
libtpu: 0.0.40
codegen_flags: <defaults>
</compile_context>

<pallas_src>
import numpy as np
import jax
import jax.numpy as jnp
from jax.experimental import pallas as pl
from jax.experimental.pallas import tpu as pltpu

# ----------------------------- config -----------------------------
N_FFT = 32
WIN = 32
HOP = 16
N_FREQ = N_FFT // 2 + 1          # 17 (onesided)
HIDDEN = 16                      # enhancement hidden channels
FPAD = 128                       # freq axis padded to one full vreg of lanes
MAX_ROWS_PER_BLOCK = 64          # keeps unrolled VPU chain under ~40 live vregs

assert WIN == 2 * HOP            # framing below relies on 50% overlap


# ----------------------------- fused kernel -----------------------------
def _fused_kernel(fn_ref, fc_ref, basis_ref, w1_ref, b1_ref, w2_ref, b2_ref,
                  target_ref, esti_ref):
    """One row-block of frames.

    fn_ref / fc_ref: (TR, WIN)   noisy / clean frames (zero-padded tail rows).
    basis_ref:       (WIN, 2*FPAD) windowed DFT basis; Re lanes [0:F),
                     Im lanes [FPAD:FPAD+F), remaining lanes zero.
    w1/b1/w2/b2:     flattened enhancement weights in SMEM (scalar reads).
    target_ref:      (TR, 2*FPAD) compressed clean STFT rows (re | im), lane dense.
    esti_ref:        (TR, 2*FPAD) enhancement output rows (re | im), lane dense.
    """
    basis = basis_ref[...]
    prec = jax.lax.Precision.HIGHEST

    def stft_compress(frames):
        # One MXU matmul per source: (TR, WIN) x (WIN, 2*FPAD).
        s = jnp.dot(frames, basis, preferred_element_type=jnp.float32,
                    precision=prec)
        re, im = s[:, :FPAD], s[:, FPAD:]
        # magnitude compression: z -> z*(re^2+im^2)^(-1/4) == |z|^0.5 * e^{j*phase}
        n2 = re * re + im * im
        inv = jnp.where(n2 > 0.0, jax.lax.rsqrt(jnp.sqrt(n2)), 0.0)  # 0 -> 0 guard
        return re * inv, im * inv

    # ---- target rows: compressed clean STFT, written once, lane dense ----
    tre, tim = stft_compress(fc_ref[...])
    target_ref[:, :FPAD] = tre
    target_ref[:, FPAD:] = tim

    # ---- esti rows: enhancement (1x1 conv 2->H, ReLU, H->2) on the VPU ----
    # TODO(synk): `enhacement` submodule is external/unspecified; pointwise conv
    # stand-in kept identical to the previous version's semantics.
    xre, xim = stft_compress(fn_ref[...])
    ore = jnp.zeros_like(xre)
    oim = jnp.zeros_like(xim)
    for c in range(HIDDEN):          # unrolled broadcast FMAs, SMEM scalar weights
        h = jnp.maximum(xre * w1_ref[c] + xim * w1_ref[HIDDEN + c] + b1_ref[c], 0.0)
        ore = ore + h * w2_ref[2 * c]
        oim = oim + h * w2_ref[2 * c + 1]
    esti_ref[:, :FPAD] = ore + b2_ref[0]
    esti_ref[:, FPAD:] = oim + b2_ref[1]


# ----------------------------- glue -----------------------------
def _round_up(x, m):
    return (x + m - 1) // m * m


def _pick_row_tile(rows):
    """Sublane-aligned row tile; >=2 grid blocks when possible (v7x megacore),
    capped at MAX_ROWS_PER_BLOCK so the unrolled VPU chain never spills."""
    rows8 = _round_up(max(rows, 1), 8)
    if rows8 <= 8:
        tile = 8
    else:
        tile = min(MAX_ROWS_PER_BLOCK, _round_up((rows8 + 1) // 2, 8))
    return _round_up(rows8, tile), tile


def _audio_normalize(x_bct):
    # AudioNormalizer(16000) at matching sample rate: mono mix over channels.
    # TODO(synk): AudioNormalizer is defined outside the reference module; mono-mix used here.
    return jnp.mean(x_bct, axis=1)


def _frame(x):
    """(B, T) -> (B*Tf, WIN) frames, center=False, 50% overlap (WIN == 2*HOP)."""
    # TODO(synk): torch.stft defaults to center=True; center=False framing kept
    # from the previously accepted version of this module.
    B, T = x.shape
    tc = T // HOP
    a = x[:, :tc * HOP].reshape(B, tc, HOP)
    frames = jnp.concatenate([a[:, :-1, :], a[:, 1:, :]], axis=-1)   # (B, Tf, WIN)
    return frames.reshape(B * (tc - 1), WIN)


def init_params():
    n = np.arange(WIN)
    window = 0.5 - 0.5 * np.cos(2.0 * np.pi * n / WIN)          # periodic Hann
    k = np.arange(WIN)[:, None].astype(np.float64)
    f = np.arange(N_FREQ)[None, :].astype(np.float64)
    ang = 2.0 * np.pi * k * f / N_FFT
    basis = np.zeros((WIN, 2 * FPAD), np.float32)               # window folded in
    basis[:, :N_FREQ] = (window[:, None] * np.cos(ang)).astype(np.float32)
    basis[:, FPAD:FPAD + N_FREQ] = (window[:, None] * -np.sin(ang)).astype(np.float32)

    key = jax.random.PRNGKey(0)
    k1, k2, k3, k4 = jax.random.split(key, 4)
    w1 = 0.3 * jax.random.normal(k1, (2, HIDDEN), jnp.float32)
    b1 = 0.1 * jax.random.normal(k2, (1, HIDDEN), jnp.float32)
    w2 = 0.3 * jax.random.normal(k3, (HIDDEN, 2), jnp.float32)
    b2 = 0.1 * jax.random.normal(k4, (1, 2), jnp.float32)
    return (jnp.asarray(basis), w1.reshape(-1), b1.reshape(-1),
            w2.reshape(-1), b2.reshape(-1))


def enhancement_solo_forward(noisy_input, clean_target, length_ratio, params):
    # length_ratio is unused in the reference forward; kept for signature parity.
    del length_ratio
    basis_w, w1f, b1f, w2f, b2f = params

    clean = _audio_normalize(clean_target[:, None, :])
    noisy = _audio_normalize(noisy_input[:, None, :])

    B, T = noisy.shape
    Tf = (T - WIN) // HOP + 1
    R = B * Tf
    Rp, TR = _pick_row_tile(R)
    nblk = Rp // TR

    # TODO(synk): for very long audio, build the 50%-overlap frames in-kernel
    # from the (B, T) signal instead of materializing them here.
    fn = jnp.pad(_frame(noisy), ((0, Rp - R), (0, 0)))           # (Rp, WIN)
    fc = jnp.pad(_frame(clean), ((0, Rp - R), (0, 0)))           # (Rp, WIN)

    smem = pl.BlockSpec(memory_space=pltpu.MemorySpace.SMEM)
    target_rows, esti_rows = pl.pallas_call(
        _fused_kernel,
        grid=(nblk,),
        in_specs=[
            pl.BlockSpec((TR, WIN), lambda i: (i, 0)),           # noisy frames
            pl.BlockSpec((TR, WIN), lambda i: (i, 0)),           # clean frames
            pl.BlockSpec((WIN, 2 * FPAD), lambda i: (0, 0)),     # DFT basis (resident)
            smem, smem, smem, smem,                              # enhancement weights
        ],
        out_specs=(
            pl.BlockSpec((TR, 2 * FPAD), lambda i: (i, 0)),      # target rows
            pl.BlockSpec((TR, 2 * FPAD), lambda i: (i, 0)),      # esti rows
        ),
        out_shape=(
            jax.ShapeDtypeStruct((Rp, 2 * FPAD), jnp.float32),
            jax.ShapeDtypeStruct((Rp, 2 * FPAD), jnp.float32),
        ),
        compiler_params=pltpu.CompilerParams(
            dimension_semantics=("parallel",)),
    )(fn, fc, basis_w, w1f, b1f, w2f, b2f)

    # Tiny wrapper-side relayout of the lane-dense kernel outputs (few KB).
    t = target_rows[:R].reshape(B, Tf, 2 * FPAD)
    target = jnp.stack([t[..., :N_FREQ], t[..., FPAD:FPAD + N_FREQ]], axis=1)  # (B,2,Tf,F)
    e = esti_rows[:R].reshape(B, Tf, 2 * FPAD)
    esti = jnp.stack([e[..., :N_FREQ], e[..., FPAD:FPAD + N_FREQ]], axis=1)    # (B,2,Tf,F)
    esti = jnp.transpose(esti, (0, 1, 3, 2))                                    # (B,2,F,Tf)
    return target, [esti]


# ----------------------------- pure-JAX reference -----------------------------
def _reference_forward(noisy, clean, params):
    basis, w1f, b1f, w2f, b2f = params
    B, T = noisy.shape
    Tf = (T - WIN) // HOP + 1
    w1 = w1f.reshape(2, HIDDEN)
    b1 = b1f.reshape(1, HIDDEN)
    w2 = w2f.reshape(HIDDEN, 2)
    b2 = b2f.reshape(1, 2)

    def stft_compress(x):
        fr = _frame(x).reshape(B, Tf, WIN)
        s = jnp.einsum('btk,kf->btf', fr, basis,
                       precision=jax.lax.Precision.HIGHEST)
        re, im = s[..., :N_FREQ], s[..., FPAD:FPAD + N_FREQ]
        n2 = re * re + im * im
        inv = jnp.where(n2 > 0.0, jax.lax.rsqrt(jnp.sqrt(n2)), 0.0)
        return re * inv, im * inv

    nre, nim = stft_compress(noisy)
    tre, tim = stft_compress(clean)
    target = jnp.stack([tre, tim], axis=1)                       # (B, 2, Tf, F)
    x = jnp.stack([nre, nim], axis=-1).reshape(-1, 2)
    h = jnp.maximum(x @ w1 + b1, 0.0)
    y = (h @ w2 + b2).reshape(B, Tf, N_FREQ, 2)
    esti = jnp.transpose(y, (0, 3, 2, 1))                        # (B, 2, F, Tf)
    return target, esti


# ----------------------------- main -----------------------------
if __name__ == "__main__":
    B, T = 2, 256
    key = jax.random.PRNGKey(0)
    kn, kc = jax.random.split(key)
    noisy = jax.random.normal(kn, (B, T), jnp.float32)
    clean = jax.random.normal(kc, (B, T), jnp.float32)
    length_ratio = jnp.ones((B,), jnp.float32)

    params = init_params()
    fwd = jax.jit(lambda a, b, c: enhancement_solo_forward(a, b, c, params))
    target_stft, esti_list = fwd(noisy, clean, length_ratio)
    jax.block_until_ready((target_stft, esti_list))

    clean_norm = _audio_normalize(clean[:, None, :])
    Tf = (T - WIN) // HOP + 1
    assert target_stft.shape == (B, 2, Tf, N_FREQ)
    assert esti_list[0].shape == (B, 2, N_FREQ, Tf)

    # tight sanity check vs. pure-JAX reference (kernel matmul uses HIGHEST precision)
    t_ref, e_ref = _reference_forward(noisy, clean, params)
    t_err = float(jnp.max(jnp.abs(t_ref - target_stft)))
    e_err = float(jnp.max(jnp.abs(e_ref - esti_list[0])))
    assert t_err < 5e-3, f"target mismatch: {t_err}"
    assert e_err < 5e-3, f"esti mismatch: {e_err}"

    print("KERNEL_OK")
</pallas_src>

<mosaic_0001>
module attributes {stable_mosaic.version = 11 : i64} {
  func.func @_fused_kernel(%arg0: i32, %arg1: memref<16x32xf32, #tpu.memory_space<vmem>>, %arg2: memref<16x32xf32, #tpu.memory_space<vmem>>, %arg3: memref<32x256xf32, #tpu.memory_space<vmem>>, %arg4: memref<32xf32, #tpu.memory_space<smem>>, %arg5: memref<16xf32, #tpu.memory_space<smem>>, %arg6: memref<32xf32, #tpu.memory_space<smem>>, %arg7: memref<2xf32, #tpu.memory_space<smem>>, %arg8: memref<16x256xf32, #tpu.memory_space<vmem>>, %arg9: memref<16x256xf32, #tpu.memory_space<vmem>>) attributes {dimension_semantics = [#tpu.dimension_semantics<parallel>], iteration_bounds = array<i64: 2>, scalar_prefetch = 0 : i64, scratch_operands = 0 : i64, tpu.core_type = #tpu.core_type<tc>, window_params = [{transform_indices = @transform_0, window_bounds = array<i64: 16, 32>}, {transform_indices = @transform_1, window_bounds = array<i64: 16, 32>}, {pipeline_mode = #tpu.pipeline_mode<synchronous>, transform_indices = @transform_2, window_bounds = array<i64: 32, 256>}, {transform_indices = @transform_3, window_bounds = array<i64: 32>}, {transform_indices = @transform_4, window_bounds = array<i64: 16>}, {transform_indices = @transform_5, window_bounds = array<i64: 32>}, {transform_indices = @transform_6, window_bounds = array<i64: 2>}, {transform_indices = @transform_7, window_bounds = array<i64: 16, 256>}, {transform_indices = @transform_8, window_bounds = array<i64: 16, 256>}]} {
    %c0 = arith.constant 0 : index
    %c0_0 = arith.constant 0 : index
    %0 = vector.load %arg3[%c0, %c0_0] : memref<32x256xf32, #tpu.memory_space<vmem>>, vector<32x256xf32>
    %c0_1 = arith.constant 0 : index
    %c0_2 = arith.constant 0 : index
    %1 = vector.load %arg2[%c0_1, %c0_2] : memref<16x32xf32, #tpu.memory_space<vmem>>, vector<16x32xf32>
    %cst = arith.constant dense<0.000000e+00> : vector<16x256xf32>
    %2 = tpu.matmul %1, %0, %cst {dimension_numbers = #tpu.dot_dimension_numbers<[1], [0], [0], [1], [0, 0, 1, 1], [], []>, precision = #tpu.contract_precision<fp32>} : vector<16x32xf32>, vector<32x256xf32>, vector<16x256xf32> -> vector<16x256xf32>
    %3 = vector.extract_strided_slice %2 {offsets = [0, 0], sizes = [16, 128], strides = [1, 1]} : vector<16x256xf32> to vector<16x128xf32>
    %4 = vector.extract_strided_slice %2 {offsets = [0, 128], sizes = [16, 128], strides = [1, 1]} : vector<16x256xf32> to vector<16x128xf32>
    %5 = arith.mulf %3, %3 : vector<16x128xf32>
    %6 = arith.mulf %4, %4 : vector<16x128xf32>
    %7 = arith.addf %5, %6 : vector<16x128xf32>
    %cst_3 = arith.constant 0.000000e+00 : f32
    %8 = vector.broadcast %cst_3 : f32 to vector<16x128xf32>
    %9 = arith.cmpf ogt, %7, %8 : vector<16x128xf32>
    %10 = math.sqrt %7 : vector<16x128xf32>
    %11 = math.rsqrt %10 : vector<16x128xf32>
    %cst_4 = arith.constant 0.000000e+00 : f32
    %12 = vector.broadcast %cst_4 : f32 to vector<16x128xf32>
    %13 = arith.select %9, %11, %12 : vector<16x128xi1>, vector<16x128xf32>
    %14 = arith.mulf %3, %13 : vector<16x128xf32>
    %15 = arith.mulf %4, %13 : vector<16x128xf32>
    %c0_5 = arith.constant 0 : index
    %c0_6 = arith.constant 0 : index
    %16 = vector.load %arg8[%c0_5, %c0_6] : memref<16x256xf32, #tpu.memory_space<vmem>>, vector<16x128xf32>
    tpu.vector_store %arg8[%c0_5, %c0_6], %14 {strides = array<i32>} : memref<16x256xf32, #tpu.memory_space<vmem>>, vector<16x128xf32>,
    %c0_7 = arith.constant 0 : index
    %c128 = arith.constant 128 : index
    %17 = vector.load %arg8[%c0_7, %c128] : memref<16x256xf32, #tpu.memory_space<vmem>>, vector<16x128xf32>
    tpu.vector_store %arg8[%c0_7, %c128], %15 {strides = array<i32>} : memref<16x256xf32, #tpu.memory_space<vmem>>, vector<16x128xf32>,
    %c0_8 = arith.constant 0 : index
    %c0_9 = arith.constant 0 : index
    %18 = vector.load %arg1[%c0_8, %c0_9] : memref<16x32xf32, #tpu.memory_space<vmem>>, vector<16x32xf32>
    %cst_10 = arith.constant dense<0.000000e+00> : vector<16x256xf32>
    %19 = tpu.matmul %18, %0, %cst_10 {dimension_numbers = #tpu.dot_dimension_numbers<[1], [0], [0], [1], [0, 0, 1, 1], [], []>, precision = #tpu.contract_precision<fp32>} : vector<16x32xf32>, vector<32x256xf32>, vector<16x256xf32> -> vector<16x256xf32>
    %20 = vector.extract_strided_slice %19 {offsets = [0, 0], sizes = [16, 128], strides = [1, 1]} : vector<16x256xf32> to vector<16x128xf32>
    %21 = vector.extract_strided_slice %19 {offsets = [0, 128], sizes = [16, 128], strides = [1, 1]} : vector<16x256xf32> to vector<16x128xf32>
    %22 = arith.mulf %20, %20 : vector<16x128xf32>
    %23 = arith.mulf %21, %21 : vector<16x128xf32>
    %24 = arith.addf %22, %23 : vector<16x128xf32>
    %cst_11 = arith.constant 0.000000e+00 : f32
    %25 = vector.broadcast %cst_11 : f32 to vector<16x128xf32>
    %26 = arith.cmpf ogt, %24, %25 : vector<16x128xf32>
    %27 = math.sqrt %24 : vector<16x128xf32>
    %28 = math.rsqrt %27 : vector<16x128xf32>
    %cst_12 = arith.constant 0.000000e+00 : f32
    %29 = vector.broadcast %cst_12 : f32 to vector<16x128xf32>
    %30 = arith.select %26, %28, %29 : vector<16x128xi1>, vector<16x128xf32>
    %31 = arith.mulf %20, %30 : vector<16x128xf32>
    %32 = arith.mulf %21, %30 : vector<16x128xf32>
    %cst_13 = arith.constant 0.000000e+00 : f32
    %33 = vector.broadcast %cst_13 : f32 to vector<16x128xf32>
    %cst_14 = arith.constant 0.000000e+00 : f32
    %34 = vector.broadcast %cst_14 : f32 to vector<16x128xf32>
    %c0_15 = arith.constant 0 : index
    %35 = memref.load %arg4[%c0_15] : memref<32xf32, #tpu.memory_space<smem>>
    %36 = vector.broadcast %35 : f32 to vector<16x128xf32>
    %37 = arith.mulf %31, %36 : vector<16x128xf32>
    %c16 = arith.constant 16 : index
    %38 = memref.load %arg4[%c16] : memref<32xf32, #tpu.memory_space<smem>>
    %39 = vector.broadcast %38 : f32 to vector<16x128xf32>
    %40 = arith.mulf %32, %39 : vector<16x128xf32>
    %41 = arith.addf %37, %40 : vector<16x128xf32>
    %c0_16 = arith.constant 0 : index
    %42 = memref.load %arg5[%c0_16] : memref<16xf32, #tpu.memory_space<smem>>
    %43 = vector.broadcast %42 : f32 to vector<16x128xf32>
    %44 = arith.addf %41, %43 : vector<16x128xf32>
    %cst_17 = arith.constant 0.000000e+00 : f32
    %45 = vector.broadcast %cst_17 : f32 to vector<16x128xf32>
    %46 = arith.maximumf %44, %45 : vector<16x128xf32>
    %c0_18 = arith.constant 0 : index
    %47 = memref.load %arg6[%c0_18] : memref<32xf32, #tpu.memory_space<smem>>
    %48 = vector.broadcast %47 : f32 to vector<16x128xf32>
    %49 = arith.mulf %46, %48 : vector<16x128xf32>
    %50 = arith.addf %33, %49 : vector<16x128xf32>
    %c1 = arith.constant 1 : index
    %51 = memref.load %arg6[%c1] : memref<32xf32, #tpu.memory_space<smem>>
    %52 = vector.broadcast %51 : f32 to vector<16x128xf32>
    %53 = arith.mulf %46, %52 : vector<16x128xf32>
    %54 = arith.addf %34, %53 : vector<16x128xf32>
    %c1_19 = arith.constant 1 : index
    %55 = memref.load %arg4[%c1_19] : memref<32xf32, #tpu.memory_space<smem>>
    %56 = vector.broadcast %55 : f32 to vector<16x128xf32>
    %57 = arith.mulf %31, %56 : vector<16x128xf32>
    %c17 = arith.constant 17 : index
    %58 = memref.load %arg4[%c17] : memref<32xf32, #tpu.memory_space<smem>>
    %59 = vector.broadcast %58 : f32 to vector<16x128xf32>
    %60 = arith.mulf %32, %59 : vector<16x128xf32>
    %61 = arith.addf %57, %60 : vector<16x128xf32>
    %c1_20 = arith.constant 1 : index
    %62 = memref.load %arg5[%c1_20] : memref<16xf32, #tpu.memory_space<smem>>
    %63 = vector.broadcast %62 : f32 to vector<16x128xf32>
    %64 = arith.addf %61, %63 : vector<16x128xf32>
    %cst_21 = arith.constant 0.000000e+00 : f32
    %65 = vector.broadcast %cst_21 : f32 to vector<16x128xf32>
    %66 = arith.maximumf %64, %65 : vector<16x128xf32>
    %c2 = arith.constant 2 : index
    %67 = memref.load %arg6[%c2] : memref<32xf32, #tpu.memory_space<smem>>
    %68 = vector.broadcast %67 : f32 to vector<16x128xf32>
    %69 = arith.mulf %66, %68 : vector<16x128xf32>
    %70 = arith.addf %50, %69 : vector<16x128xf32>
    %c3 = arith.constant 3 : index
    %71 = memref.load %arg6[%c3] : memref<32xf32, #tpu.memory_space<smem>>
    %72 = vector.broadcast %71 : f32 to vector<16x128xf32>
    %73 = arith.mulf %66, %72 : vector<16x128xf32>
    %74 = arith.addf %54, %73 : vector<16x128xf32>
    %c2_22 = arith.constant 2 : index
    %75 = memref.load %arg4[%c2_22] : memref<32xf32, #tpu.memory_space<smem>>
    %76 = vector.broadcast %75 : f32 to vector<16x128xf32>
    %77 = arith.mulf %31, %76 : vector<16x128xf32>
    %c18 = arith.constant 18 : index
    %78 = memref.load %arg4[%c18] : memref<32xf32, #tpu.memory_space<smem>>
    %79 = vector.broadcast %78 : f32 to vector<16x128xf32>
    %80 = arith.mulf %32, %79 : vector<16x128xf32>
    %81 = arith.addf %77, %80 : vector<16x128xf32>
    %c2_23 = arith.constant 2 : index
    %82 = memref.load %arg5[%c2_23] : memref<16xf32, #tpu.memory_space<smem>>
    %83 = vector.broadcast %82 : f32 to vector<16x128xf32>
    %84 = arith.addf %81, %83 : vector<16x128xf32>
    %cst_24 = arith.constant 0.000000e+00 : f32
    %85 = vector.broadcast %cst_24 : f32 to vector<16x128xf32>
    %86 = arith.maximumf %84, %85 : vector<16x128xf32>
    %c4 = arith.constant 4 : index
    %87 = memref.load %arg6[%c4] : memref<32xf32, #tpu.memory_space<smem>>
    %88 = vector.broadcast %87 : f32 to vector<16x128xf32>
    %89 = arith.mulf %86, %88 : vector<16x128xf32>
    %90 = arith.addf %70, %89 : vector<16x128xf32>
    %c5 = arith.constant 5 : index
    %91 = memref.load %arg6[%c5] : memref<32xf32, #tpu.memory_space<smem>>
    %92 = vector.broadcast %91 : f32 to vector<16x128xf32>
    %93 = arith.mulf %86, %92 : vector<16x128xf32>
    %94 = arith.addf %74, %93 : vector<16x128xf32>
    %c3_25 = arith.constant 3 : index
    %95 = memref.load %arg4[%c3_25] : memref<32xf32, #tpu.memory_space<smem>>
    %96 = vector.broadcast %95 : f32 to vector<16x128xf32>
    %97 = arith.mulf %31, %96 : vector<16x128xf32>
    %c19 = arith.constant 19 : index
    %98 = memref.load %arg4[%c19] : memref<32xf32, #tpu.memory_space<smem>>
    %99 = vector.broadcast %98 : f32 to vector<16x128xf32>
    %100 = arith.mulf %32, %99 : vector<16x128xf32>
    %101 = arith.addf %97, %100 : vector<16x128xf32>
    %c3_26 = arith.constant 3 : index
    %102 = memref.load %arg5[%c3_26] : memref<16xf32, #tpu.memory_space<smem>>
    %103 = vector.broadcast %102 : f32 to vector<16x128xf32>
    %104 = arith.addf %101, %103 : vector<16x128xf32>
    %cst_27 = arith.constant 0.000000e+00 : f32
    %105 = vector.broadcast %cst_27 : f32 to vector<16x128xf32>
    %106 = arith.maximumf %104, %105 : vector<16x128xf32>
    %c6 = arith.constant 6 : index
    %107 = memref.load %arg6[%c6] : memref<32xf32, #tpu.memory_space<smem>>
    %108 = vector.broadcast %107 : f32 to vector<16x128xf32>
    %109 = arith.mulf %106, %108 : vector<16x128xf32>
    %110 = arith.addf %90, %109 : vector<16x128xf32>
    %c7 = arith.constant 7 : index
    %111 = memref.load %arg6[%c7] : memref<32xf32, #tpu.memory_space<smem>>
    %112 = vector.broadcast %111 : f32 to vector<16x128xf32>
    %113 = arith.mulf %106, %112 : vector<16x128xf32>
    %114 = arith.addf %94, %113 : vector<16x128xf32>
    %c4_28 = arith.constant 4 : index
    %115 = memref.load %arg4[%c4_28] : memref<32xf32, #tpu.memory_space<smem>>
    %116 = vector.broadcast %115 : f32 to vector<16x128xf32>
    %117 = arith.mulf %31, %116 : vector<16x128xf32>
    %c20 = arith.constant 20 : index
    %118 = memref.load %arg4[%c20] : memref<32xf32, #tpu.memory_space<smem>>
    %119 = vector.broadcast %118 : f32 to vector<16x128xf32>
    %120 = arith.mulf %32, %119 : vector<16x128xf32>
    %121 = arith.addf %117, %120 : vector<16x128xf32>
    %c4_29 = arith.constant 4 : index
    %122 = memref.load %arg5[%c4_29] : memref<16xf32, #tpu.memory_space<smem>>
    %123 = vector.broadcast %122 : f32 to vector<16x128xf32>
    %124 = arith.addf %121, %123 : vector<16x128xf32>
    %cst_30 = arith.constant 0.000000e+00 : f32
    %125 = vector.broadcast %cst_30 : f32 to vector<16x128xf32>
    %126 = arith.maximumf %124, %125 : vector<16x128xf32>
    %c8 = arith.constant 8 : index
    %127 = memref.load %arg6[%c8] : memref<32xf32, #tpu.memory_space<smem>>
    %128 = vector.broadcast %127 : f32 to vector<16x128xf32>
    %129 = arith.mulf %126, %128 : vector<16x128xf32>
    %130 = arith.addf %110, %129 : vector<16x128xf32>
    %c9 = arith.constant 9 : index
    %131 = memref.load %arg6[%c9] : memref<32xf32, #tpu.memory_space<smem>>
    %132 = vector.broadcast %131 : f32 to vector<16x128xf32>
    %133 = arith.mulf %126, %132 : vector<16x128xf32>
    %134 = arith.addf %114, %133 : vector<16x128xf32>
    %c5_31 = arith.constant 5 : index
    %135 = memref.load %arg4[%c5_31] : memref<32xf32, #tpu.memory_space<smem>>
    %136 = vector.broadcast %135 : f32 to vector<16x128xf32>
    %137 = arith.mulf %31, %136 : vector<16x128xf32>
    %c21 = arith.constant 21 : index
    %138 = memref.load %arg4[%c21] : memref<32xf32, #tpu.memory_space<smem>>
    %139 = vector.broadcast %138 : f32 to vector<16x128xf32>
    %140 = arith.mulf %32, %139 : vector<16x128xf32>
    %141 = arith.addf %137, %140 : vector<16x128xf32>
    %c5_32 = arith.constant 5 : index
    %142 = memref.load %arg5[%c5_32] : memref<16xf32, #tpu.memory_space<smem>>
    %143 = vector.broadcast %142 : f32 to vector<16x128xf32>
    %144 = arith.addf %141, %143 : vector<16x128xf32>
    %cst_33 = arith.constant 0.000000e+00 : f32
    %145 = vector.broadcast %cst_33 : f32 to vector<16x128xf32>
    %146 = arith.maximumf %144, %145 : vector<16x128xf32>
    %c10 = arith.constant 10 : index
    %147 = memref.load %arg6[%c10] : memref<32xf32, #tpu.memory_space<smem>>
    %148 = vector.broadcast %147 : f32 to vector<16x128xf32>
    %149 = arith.mulf %146, %148 : vector<16x128xf32>
    %150 = arith.addf %130, %149 : vector<16x128xf32>
    %c11 = arith.constant 11 : index
    %151 = memref.load %arg6[%c11] : memref<32xf32, #tpu.memory_space<smem>>
    %152 = vector.broadcast %151 : f32 to vector<16x128xf32>
    %153 = arith.mulf %146, %152 : vector<16x128xf32>
    %154 = arith.addf %134, %153 : vector<16x128xf32>
    %c6_34 = arith.constant 6 : index
    %155 = memref.load %arg4[%c6_34] : memref<32xf32, #tpu.memory_space<smem>>
    %156 = vector.broadcast %155 : f32 to vector<16x128xf32>
    %157 = arith.mulf %31, %156 : vector<16x128xf32>
    %c22 = arith.constant 22 : index
    %158 = memref.load %arg4[%c22] : memref<32xf32, #tpu.memory_space<smem>>
    %159 = vector.broadcast %158 : f32 to vector<16x128xf32>
    %160 = arith.mulf %32, %159 : vector<16x128xf32>
    %161 = arith.addf %157, %160 : vector<16x128xf32>
    %c6_35 = arith.constant 6 : index
    %162 = memref.load %arg5[%c6_35] : memref<16xf32, #tpu.memory_space<smem>>
    %163 = vector.broadcast %162 : f32 to vector<16x128xf32>
    %164 = arith.addf %161, %163 : vector<16x128xf32>
    %cst_36 = arith.constant 0.000000e+00 : f32
    %165 = vector.broadcast %cst_36 : f32 to vector<16x128xf32>
    %166 = arith.maximumf %164, %165 : vector<16x128xf32>
    %c12 = arith.constant 12 : index
    %167 = memref.load %arg6[%c12] : memref<32xf32, #tpu.memory_space<smem>>
    %168 = vector.broadcast %167 : f32 to vector<16x128xf32>
    %169 = arith.mulf %166, %168 : vector<16x128xf32>
    %170 = arith.addf %150, %169 : vector<16x128xf32>
    %c13 = arith.constant 13 : index
    %171 = memref.load %arg6[%c13] : memref<32xf32, #tpu.memory_space<smem>>
    %172 = vector.broadcast %171 : f32 to vector<16x128xf32>
    %173 = arith.mulf %166, %172 : vector<16x128xf32>
    %174 = arith.addf %154, %173 : vector<16x128xf32>
    %c7_37 = arith.constant 7 : index
    %175 = memref.load %arg4[%c7_37] : memref<32xf32, #tpu.memory_space<smem>>
    %176 = vector.broadcast %175 : f32 to vector<16x128xf32>
    %177 = arith.mulf %31, %176 : vector<16x128xf32>
    %c23 = arith.constant 23 : index
    %178 = memref.load %arg4[%c23] : memref<32xf32, #tpu.memory_space<smem>>
    %179 = vector.broadcast %178 : f32 to vector<16x128xf32>
    %180 = arith.mulf %32, %179 : vector<16x128xf32>
    %181 = arith.addf %177, %180 : vector<16x128xf32>
    %c7_38 = arith.constant 7 : index
    %182 = memref.load %arg5[%c7_38] : memref<16xf32, #tpu.memory_space<smem>>
    %183 = vector.broadcast %182 : f32 to vector<16x128xf32>
    %184 = arith.addf %181, %183 : vector<16x128xf32>
    %cst_39 = arith.constant 0.000000e+00 : f32
    %185 = vector.broadcast %cst_39 : f32 to vector<16x128xf32>
    %186 = arith.maximumf %184, %185 : vector<16x128xf32>
    %c14 = arith.constant 14 : index
    %187 = memref.load %arg6[%c14] : memref<32xf32, #tpu.memory_space<smem>>
    %188 = vector.broadcast %187 : f32 to vector<16x128xf32>
    %189 = arith.mulf %186, %188 : vector<16x128xf32>
    %190 = arith.addf %170, %189 : vector<16x128xf32>
    %c15 = arith.constant 15 : index
    %191 = memref.load %arg6[%c15] : memref<32xf32, #tpu.memory_space<smem>>
    %192 = vector.broadcast %191 : f32 to vector<16x128xf32>
    %193 = arith.mulf %186, %192 : vector<16x128xf32>
    %194 = arith.addf %174, %193 : vector<16x128xf32>
    %c8_40 = arith.constant 8 : index
    %195 = memref.load %arg4[%c8_40] : memref<32xf32, #tpu.memory_space<smem>>
    %196 = vector.broadcast %195 : f32 to vector<16x128xf32>
    %197 = arith.mulf %31, %196 : vector<16x128xf32>
    %c24 = arith.constant 24 : index
    %198 = memref.load %arg4[%c24] : memref<32xf32, #tpu.memory_space<smem>>
    %199 = vector.broadcast %198 : f32 to vector<16x128xf32>
    %200 = arith.mulf %32, %199 : vector<16x128xf32>
    %201 = arith.addf %197, %200 : vector<16x128xf32>
    %c8_41 = arith.constant 8 : index
    %202 = memref.load %arg5[%c8_41] : memref<16xf32, #tpu.memory_space<smem>>
    %203 = vector.broadcast %202 : f32 to vector<16x128xf32>
    %204 = arith.addf %201, %203 : vector<16x128xf32>
    %cst_42 = arith.constant 0.000000e+00 : f32
    %205 = vector.broadcast %cst_42 : f32 to vector<16x128xf32>
    %206 = arith.maximumf %204, %205 : vector<16x128xf32>
    %c16_43 = arith.constant 16 : index
    %207 = memref.load %arg6[%c16_43] : memref<32xf32, #tpu.memory_space<smem>>
    %208 = vector.broadcast %207 : f32 to vector<16x128xf32>
    %209 = arith.mulf %206, %208 : vector<16x128xf32>
    %210 = arith.addf %190, %209 : vector<16x128xf32>
    %c17_44 = arith.constant 17 : index
    %211 = memref.load %arg6[%c17_44] : memref<32xf32, #tpu.memory_space<smem>>
    %212 = vector.broadcast %211 : f32 to vector<16x128xf32>
    %213 = arith.mulf %206, %212 : vector<16x128xf32>
    %214 = arith.addf %194, %213 : vector<16x128xf32>
    %c9_45 = arith.constant 9 : index
    %215 = memref.load %arg4[%c9_45] : memref<32xf32, #tpu.memory_space<smem>>
    %216 = vector.broadcast %215 : f32 to vector<16x128xf32>
    %217 = arith.mulf %31, %216 : vector<16x128xf32>
    %c25 = arith.constant 25 : index
    %218 = memref.load %arg4[%c25] : memref<32xf32, #tpu.memory_space<smem>>
    %219 = vector.broadcast %218 : f32 to vector<16x128xf32>
    %220 = arith.mulf %32, %219 : vector<16x128xf32>
    %221 = arith.addf %217, %220 : vector<16x128xf32>
    %c9_46 = arith.constant 9 : index
    %222 = memref.load %arg5[%c9_46] : memref<16xf32, #tpu.memory_space<smem>>
    %223 = vector.broadcast %222 : f32 to vector<16x128xf32>
    %224 = arith.addf %221, %223 : vector<16x128xf32>
    %cst_47 = arith.constant 0.000000e+00 : f32
    %225 = vector.broadcast %cst_47 : f32 to vector<16x128xf32>
    %226 = arith.maximumf %224, %225 : vector<16x128xf32>
    %c18_48 = arith.constant 18 : index
    %227 = memref.load %arg6[%c18_48] : memref<32xf32, #tpu.memory_space<smem>>
    %228 = vector.broadcast %227 : f32 to vector<16x128xf32>
    %229 = arith.mulf %226, %228 : vector<16x128xf32>
    %230 = arith.addf %210, %229 : vector<16x128xf32>
    %c19_49 = arith.constant 19 : index
    %231 = memref.load %arg6[%c19_49] : memref<32xf32, #tpu.memory_space<smem>>
    %232 = vector.broadcast %231 : f32 to vector<16x128xf32>
    %233 = arith.mulf %226, %232 : vector<16x128xf32>
    %234 = arith.addf %214, %233 : vector<16x128xf32>
    %c10_50 = arith.constant 10 : index
    %235 = memref.load %arg4[%c10_50] : memref<32xf32, #tpu.memory_space<smem>>
    %236 = vector.broadcast %235 : f32 to vector<16x128xf32>
    %237 = arith.mulf %31, %236 : vector<16x128xf32>
    %c26 = arith.constant 26 : index
    %238 = memref.load %arg4[%c26] : memref<32xf32, #tpu.memory_space<smem>>
    %239 = vector.broadcast %238 : f32 to vector<16x128xf32>
    %240 = arith.mulf %32, %239 : vector<16x128xf32>
    %241 = arith.addf %237, %240 : vector<16x128xf32>
    %c10_51 = arith.constant 10 : index
    %242 = memref.load %arg5[%c10_51] : memref<16xf32, #tpu.memory_space<smem>>
    %243 = vector.broadcast %242 : f32 to vector<16x128xf32>
    %244 = arith.addf %241, %243 : vector<16x128xf32>
    %cst_52 = arith.constant 0.000000e+00 : f32
    %245 = vector.broadcast %cst_52 : f32 to vector<16x128xf32>
    %246 = arith.maximumf %244, %245 : vector<16x128xf32>
    %c20_53 = arith.constant 20 : index
    %247 = memref.load %arg6[%c20_53] : memref<32xf32, #tpu.memory_space<smem>>
    %248 = vector.broadcast %247 : f32 to vector<16x128xf32>
    %249 = arith.mulf %246, %248 : vector<16x128xf32>
    %250 = arith.addf %230, %249 : vector<16x128xf32>
    %c21_54 = arith.constant 21 : index
    %251 = memref.load %arg6[%c21_54] : memref<32xf32, #tpu.memory_space<smem>>
    %252 = vector.broadcast %251 : f32 to vector<16x128xf32>
    %253 = arith.mulf %246, %252 : vector<16x128xf32>
    %254 = arith.addf %234, %253 : vector<16x128xf32>
    %c11_55 = arith.constant 11 : index
    %255 = memref.load %arg4[%c11_55] : memref<32xf32, #tpu.memory_space<smem>>
    %256 = vector.broadcast %255 : f32 to vector<16x128xf32>
    %257 = arith.mulf %31, %256 : vector<16x128xf32>
    %c27 = arith.constant 27 : index
    %258 = memref.load %arg4[%c27] : memref<32xf32, #tpu.memory_space<smem>>
    %259 = vector.broadcast %258 : f32 to vector<16x128xf32>
    %260 = arith.mulf %32, %259 : vector<16x128xf32>
    %261 = arith.addf %257, %260 : vector<16x128xf32>
    %c11_56 = arith.constant 11 : index
    %262 = memref.load %arg5[%c11_56] : memref<16xf32, #tpu.memory_space<smem>>
    %263 = vector.broadcast %262 : f32 to vector<16x128xf32>
    %264 = arith.addf %261, %263 : vector<16x128xf32>
    %cst_57 = arith.constant 0.000000e+00 : f32
    %265 = vector.broadcast %cst_57 : f32 to vector<16x128xf32>
    %266 = arith.maximumf %264, %265 : vector<16x128xf32>
    %c22_58 = arith.constant 22 : index
    %267 = memref.load %arg6[%c22_58] : memref<32xf32, #tpu.memory_space<smem>>
    %268 = vector.broadcast %267 : f32 to vector<16x128xf32>
    %269 = arith.mulf %266, %268 : vector<16x128xf32>
    %270 = arith.addf %250, %269 : vector<16x128xf32>
    %c23_59 = arith.constant 23 : index
    %271 = memref.load %arg6[%c23_59] : memref<32xf32, #tpu.memory_space<smem>>
    %272 = vector.broadcast %271 : f32 to vector<16x128xf32>
    %273 = arith.mulf %266, %272 : vector<16x128xf32>
    %274 = arith.addf %254, %273 : vector<16x128xf32>
    %c12_60 = arith.constant 12 : index
    %275 = memref.load %arg4[%c12_60] : memref<32xf32, #tpu.memory_space<smem>>
    %276 = vector.broadcast %275 : f32 to vector<16x128xf32>
    %277 = arith.mulf %31, %276 : vector<16x128xf32>
    %c28 = arith.constant 28 : index
    %278 = memref.load %arg4[%c28] : memref<32xf32, #tpu.memory_space<smem>>
    %279 = vector.broadcast %278 : f32 to vector<16x128xf32>
    %280 = arith.mulf %32, %279 : vector<16x128xf32>
    %281 = arith.addf %277, %280 : vector<16x128xf32>
    %c12_61 = arith.constant 12 : index
    %282 = memref.load %arg5[%c12_61] : memref<16xf32, #tpu.memory_space<smem>>
    %283 = vector.broadcast %282 : f32 to vector<16x128xf32>
    %284 = arith.addf %281, %283 : vector<16x128xf32>
    %cst_62 = arith.constant 0.000000e+00 : f32
    %285 = vector.broadcast %cst_62 : f32 to vector<16x128xf32>
    %286 = arith.maximumf %284, %285 : vector<16x128xf32>
    %c24_63 = arith.constant 24 : index
    %287 = memref.load %arg6[%c24_63] : memref<32xf32, #tpu.memory_space<smem>>
    %288 = vector.broadcast %287 : f32 to vector<16x128xf32>
    %289 = arith.mulf %286, %288 : vector<16x128xf32>
    %290 = arith.addf %270, %289 : vector<16x128xf32>
    %c25_64 = arith.constant 25 : index
    %291 = memref.load %arg6[%c25_64] : memref<32xf32, #tpu.memory_space<smem>>
    %292 = vector.broadcast %291 : f32 to vector<16x128xf32>
    %293 = arith.mulf %286, %292 : vector<16x128xf32>
    %294 = arith.addf %274, %293 : vector<16x128xf32>
    %c13_65 = arith.constant 13 : index
    %295 = memref.load %arg4[%c13_65] : memref<32xf32, #tpu.memory_space<smem>>
    %296 = vector.broadcast %295 : f32 to vector<16x128xf32>
    %297 = arith.mulf %31, %296 : vector<16x128xf32>
    %c29 = arith.constant 29 : index
    %298 = memref.load %arg4[%c29] : memref<32xf32, #tpu.memory_space<smem>>
    %299 = vector.broadcast %298 : f32 to vector<16x128xf32>
    %300 = arith.mulf %32, %299 : vector<16x128xf32>
    %301 = arith.addf %297, %300 : vector<16x128xf32>
    %c13_66 = arith.constant 13 : index
    %302 = memref.load %arg5[%c13_66] : memref<16xf32, #tpu.memory_space<smem>>
    %303 = vector.broadcast %302 : f32 to vector<16x128xf32>
    %304 = arith.addf %301, %303 : vector<16x128xf32>
    %cst_67 = arith.constant 0.000000e+00 : f32
    %305 = vector.broadcast %cst_67 : f32 to vector<16x128xf32>
    %306 = arith.maximumf %304, %305 : vector<16x128xf32>
    %c26_68 = arith.constant 26 : index
    %307 = memref.load %arg6[%c26_68] : memref<32xf32, #tpu.memory_space<smem>>
    %308 = vector.broadcast %307 : f32 to vector<16x128xf32>
    %309 = arith.mulf %306, %308 : vector<16x128xf32>
    %310 = arith.addf %290, %309 : vector<16x128xf32>
    %c27_69 = arith.constant 27 : index
    %311 = memref.load %arg6[%c27_69] : memref<32xf32, #tpu.memory_space<smem>>
    %312 = vector.broadcast %311 : f32 to vector<16x128xf32>
    %313 = arith.mulf %306, %312 : vector<16x128xf32>
    %314 = arith.addf %294, %313 : vector<16x128xf32>
    %c14_70 = arith.constant 14 : index
    %315 = memref.load %arg4[%c14_70] : memref<32xf32, #tpu.memory_space<smem>>
    %316 = vector.broadcast %315 : f32 to vector<16x128xf32>
    %317 = arith.mulf %31, %316 : vector<16x128xf32>
    %c30 = arith.constant 30 : index
    %318 = memref.load %arg4[%c30] : memref<32xf32, #tpu.memory_space<smem>>
    %319 = vector.broadcast %318 : f32 to vector<16x128xf32>
    %320 = arith.mulf %32, %319 : vector<16x128xf32>
    %321 = arith.addf %317, %320 : vector<16x128xf32>
    %c14_71 = arith.constant 14 : index
    %322 = memref.load %arg5[%c14_71] : memref<16xf32, #tpu.memory_space<smem>>
    %323 = vector.broadcast %322 : f32 to vector<16x128xf32>
    %324 = arith.addf %321, %323 : vector<16x128xf32>
    %cst_72 = arith.constant 0.000000e+00 : f32
    %325 = vector.broadcast %cst_72 : f32 to vector<16x128xf32>
    %326 = arith.maximumf %324, %325 : vector<16x128xf32>
    %c28_73 = arith.constant 28 : index
    %327 = memref.load %arg6[%c28_73] : memref<32xf32, #tpu.memory_space<smem>>
    %328 = vector.broadcast %327 : f32 to vector<16x128xf32>
    %329 = arith.mulf %326, %328 : vector<16x128xf32>
    %330 = arith.addf %310, %329 : vector<16x128xf32>
    %c29_74 = arith.constant 29 : index
    %331 = memref.load %arg6[%c29_74] : memref<32xf32, #tpu.memory_space<smem>>
    %332 = vector.broadcast %331 : f32 to vector<16x128xf32>
    %333 = arith.mulf %326, %332 : vector<16x128xf32>
    %334 = arith.addf %314, %333 : vector<16x128xf32>
    %c15_75 = arith.constant 15 : index
    %335 = memref.load %arg4[%c15_75] : memref<32xf32, #tpu.memory_space<smem>>
    %336 = vector.broadcast %335 : f32 to vector<16x128xf32>
    %337 = arith.mulf %31, %336 : vector<16x128xf32>
    %c31 = arith.constant 31 : index
    %338 = memref.load %arg4[%c31] : memref<32xf32, #tpu.memory_space<smem>>
    %339 = vector.broadcast %338 : f32 to vector<16x128xf32>
    %340 = arith.mulf %32, %339 : vector<16x128xf32>
    %341 = arith.addf %337, %340 : vector<16x128xf32>
    %c15_76 = arith.constant 15 : index
    %342 = memref.load %arg5[%c15_76] : memref<16xf32, #tpu.memory_space<smem>>
    %343 = vector.broadcast %342 : f32 to vector<16x128xf32>
    %344 = arith.addf %341, %343 : vector<16x128xf32>
    %cst_77 = arith.constant 0.000000e+00 : f32
    %345 = vector.broadcast %cst_77 : f32 to vector<16x128xf32>
    %346 = arith.maximumf %344, %345 : vector<16x128xf32>
    %c30_78 = arith.constant 30 : index
    %347 = memref.load %arg6[%c30_78] : memref<32xf32, #tpu.memory_space<smem>>
    %348 = vector.broadcast %347 : f32 to vector<16x128xf32>
    %349 = arith.mulf %346, %348 : vector<16x128xf32>
    %350 = arith.addf %330, %349 : vector<16x128xf32>
    %c31_79 = arith.constant 31 : index
    %351 = memref.load %arg6[%c31_79] : memref<32xf32, #tpu.memory_space<smem>>
    %352 = vector.broadcast %351 : f32 to vector<16x128xf32>
    %353 = arith.mulf %346, %352 : vector<16x128xf32>
    %354 = arith.addf %334, %353 : vector<16x128xf32>
    %c0_80 = arith.constant 0 : index
    %355 = memref.load %arg7[%c0_80] : memref<2xf32, #tpu.memory_space<smem>>
    %356 = vector.broadcast %355 : f32 to vector<16x128xf32>
    %357 = arith.addf %350, %356 : vector<16x128xf32>
    %c0_81 = arith.constant 0 : index
    %c0_82 = arith.constant 0 : index
    %358 = vector.load %arg9[%c0_81, %c0_82] : memref<16x256xf32, #tpu.memory_space<vmem>>, vector<16x128xf32>
    tpu.vector_store %arg9[%c0_81, %c0_82], %357 {strides = array<i32>} : memref<16x256xf32, #tpu.memory_space<vmem>>, vector<16x128xf32>,
    %c1_83 = arith.constant 1 : index
    %359 = memref.load %arg7[%c1_83] : memref<2xf32, #tpu.memory_space<smem>>
    %360 = vector.broadcast %359 : f32 to vector<16x128xf32>
    %361 = arith.addf %354, %360 : vector<16x128xf32>
    %c0_84 = arith.constant 0 : index
    %c128_85 = arith.constant 128 : index
    %362 = vector.load %arg9[%c0_84, %c128_85] : memref<16x256xf32, #tpu.memory_space<vmem>>, vector<16x128xf32>
    tpu.vector_store %arg9[%c0_84, %c128_85], %361 {strides = array<i32>} : memref<16x256xf32, #tpu.memory_space<vmem>>, vector<16x128xf32>,
    return
  }
  func.func @transform_0(%arg0: i32) -> (i32, i32) {
    %c0_i32 = arith.constant 0 : i32
    %c0_i32_0 = arith.constant 0 : i32
    return %arg0, %c0_i32 : i32, i32
  }
  func.func @transform_1(%arg0: i32) -> (i32, i32) {
    %c0_i32 = arith.constant 0 : i32
    %c0_i32_0 = arith.constant 0 : i32
    return %arg0, %c0_i32 : i32, i32
  }
  func.func @transform_2(%arg0: i32) -> (i32, i32) {
    %c0_i32 = arith.constant 0 : i32
    %c0_i32_0 = arith.constant 0 : i32
    %c0_i32_1 = arith.constant 0 : i32
    return %c0_i32, %c0_i32_0 : i32, i32
  }
  func.func @transform_3(%arg0: i32) -> i32 {
    %c0_i32 = arith.constant 0 : i32
    %c0_i32_0 = arith.constant 0 : i32
    return %c0_i32 : i32
  }
  func.func @transform_4(%arg0: i32) -> i32 {
    %c0_i32 = arith.constant 0 : i32
    %c0_i32_0 = arith.constant 0 : i32
    return %c0_i32 : i32
  }
  func.func @transform_5(%arg0: i32) -> i32 {
    %c0_i32 = arith.constant 0 : i32
    %c0_i32_0 = arith.constant 0 : i32
    return %c0_i32 : i32
  }
  func.func @transform_6(%arg0: i32) -> i32 {
    %c0_i32 = arith.constant 0 : i32
    %c0_i32_0 = arith.constant 0 : i32
    return %c0_i32 : i32
  }
  func.func @transform_7(%arg0: i32) -> (i32, i32) {
    %c0_i32 = arith.constant 0 : i32
    %c0_i32_0 = arith.constant 0 : i32
    return %arg0, %c0_i32 : i32, i32
  }
  func.func @transform_8(%arg0: i32) -> (i32, i32) {
    %c0_i32 = arith.constant 0 : i32
    %c0_i32_0 = arith.constant 0 : i32
    return %arg0, %c0_i32 : i32, i32
  }
}

</mosaic_0001>

<llo_original>
// kernel: _lambda_.1
$region0: #{_lambda_.1}
  #allocation0 [shape = 'u32[]', space=smem, size = 0x4, offset = 0x4, fixed_abs, tag = 'smem constant byte address 0x4 - core index']
  #allocation1 [shape = 'u32[72,128]{1,0:T(1,128)}', space=vmem, size = 0x9000, scoped, tag = 'internal scratch']
  %s0 = inlined_call_operand.vmem [shape: f32[32,32], index: 0, kind: input, shape index: {}]
  %s1 = inlined_call_operand.vmem [shape: f32[32,32], index: 1, kind: input, shape index: {}]
  %s2 = inlined_call_operand.vmem [shape: f32[32,256], index: 2, kind: input, shape index: {}]
  %s3 = inlined_call_operand.vmem [shape: f32[32], index: 3, kind: input, shape index: {}]
  %s4 = inlined_call_operand.vmem [shape: f32[16], index: 4, kind: input, shape index: {}]
  %s5 = inlined_call_operand.vmem [shape: f32[32], index: 5, kind: input, shape index: {}]
  %s6 = inlined_call_operand.vmem [shape: f32[2], index: 6, kind: input, shape index: {}]
  %s7 = inlined_call_operand.vmem [shape: f32[32,256], index: 7, kind: output, shape index: {0}]
  %s8 = inlined_call_operand.vmem [shape: f32[32,256], index: 8, kind: output, shape index: {1}]
  %9 = xla_tuple %s7, %s8
  %s10 = sld [smem:[#allocation0]]
  $region85: #{_lambda_.1} parent=0
    _
  %s12 = ssub.s32 1, %s10
  %s13 = scalar_select 0, %s12, %s10
  $region1: #{_lambda_.1} parent=0
    #allocation2 [shape = 'u8[512]{0}', space=smem, size = 0x200, scoped, tag = 'input window, operand 3, single buffered']
    #allocation3 [shape = 's32[2]{0}', space=sflag, size = 0x8, scoped, tag = 'scoped memory for _lambda_.1']
    #allocation4 [shape = 'u8[512]{0}', space=smem, size = 0x200, scoped, tag = 'input window, operand 4, single buffered']
    #allocation5 [shape = 's32[1]{0}', space=sflag, size = 0x4, scoped, tag = 'scoped memory for _lambda_.1']
    #allocation6 [shape = 'u8[512]{0}', space=smem, size = 0x200, scoped, tag = 'input window, operand 5, single buffered']
    #allocation7 [shape = 'u8[512]{0}', space=smem, size = 0x200, scoped, tag = 'input window, operand 6, single buffered']
    #allocation8 [shape = 's32[1]{0}', space=sflag, size = 0x4, scoped, tag = 'scoped memory for _lambda_.1']
    %14 = vsyncpa [#allocation3], 0
    %15 = vsyncpa [#allocation5], 0
    %16 = vsyncpa [#allocation8], 0
    loop: start=0, step=1, limit=4
    $region2: #{_lambda_.1} parent=1 // loop_pre_header
      _
    $region3: #{_lambda_.1} parent=1 // loop_header
      %s18 = sphi 0, %s22
      %p19 = scmp.ge.s32.totalorder %s18, 4
      %s28 = sphi 0, %s30
      %s31 = sphi 0, %s28
      %s32 = sphi 0, %s31
      %s48 = sphi 0, %s32
      %s54 = sphi 0, %s56
      %s57 = sphi 0, %s54
      %s58 = sphi 0, %s57
      %s74 = sphi 0, %s58
      %s78 = sphi 0, %s78
      %s80 = sphi 0, %s78
      %s81 = sphi 0, %s80
      %s95 = sphi 0, %s81
      %s99 = sphi 0, %s99
      %s101 = sphi 0, %s99
      %s102 = sphi 0, %s101
      %s116 = sphi 0, %s102
      %s120 = sphi 0, %s120
      %s122 = sphi 0, %s120
      %s123 = sphi 0, %s122
      %s137 = sphi 0, %s123
      %s141 = sphi 0, %s141
      %s143 = sphi 0, %s141
      %s144 = sphi 0, %s143
      %s158 = sphi 0, %s144
      %s162 = sphi 0, %s162
      %s164 = sphi 0, %s162
      %s165 = sphi 0, %s164
      %s179 = sphi 0, %s165
      %s185 = sphi 0, %s187
      %s188 = sphi 0, %s185
      %s189 = sphi 0, %s188
      %s205 = sphi 0, %s189
      %s211 = sphi 0, %s213
      %s214 = sphi 0, %s211
      %s215 = sphi 0, %s214
      %s231 = sphi 0, %s215
    $region4: #{_lambda_.1} parent=1 // loop_header_branch
      %21 = sbr.rel (%p19) target = $region8
    $region5: #{_lambda_.1} parent=1 // loop_body
      %s23 = ssub.s32 %s18, 1
      %s24 = ssub.s32 %s18, 2
      %s25 = sadd.s32 %s18, 1
      %s26 = ssub.s32 %s18, %s25
      %p27 = scmp.eq.s32.totalorder %s26, 0
      %s29 = sadd.s32 %s28, 1
      %s30 = scalar_select %p27, %s28, %s29
      %p33 = pneg %p27
      %p34 = scmp.eq.s32.totalorder %s18, 1
      %p35 = por %p33, %p34
      %p36 = scmp.ne.s32.totalorder %s28, %s31
      %p37 = scmp.eq.s32.totalorder %s18, 0
      %p38 = por %p36, %p37
      %p39 = scmp.ne.s32.totalorder %s28, %s31
      %p40 = scmp.eq.s32.totalorder %s23, 1
      %p41 = por %p39, %p40
      %p42 = scmp.ne.s32.totalorder %s31, %s32
      %p43 = scmp.eq.s32.totalorder %s23, 0
      %p44 = por %p42, %p43
      %p45 = scmp.ne.s32.totalorder %s31, %s32
      %p46 = scmp.eq.s32.totalorder %s24, 1
      %p47 = por %p45, %p46
      %p49 = scmp.ne.s32.totalorder %s32, %s48
      %p50 = scmp.eq.s32.totalorder %s24, 0
      %p51 = por %p49, %p50
      %s52 = ssub.s32 %s18, %s25
      %p53 = scmp.eq.s32.totalorder %s52, 0
      %s55 = sadd.s32 %s54, 1
      %s56 = scalar_select %p53, %s54, %s55
      %p59 = pneg %p53
      %p60 = scmp.eq.s32.totalorder %s18, 1
      %p61 = por %p59, %p60
      %p62 = scmp.ne.s32.totalorder %s54, %s57
      %p63 = scmp.eq.s32.totalorder %s18, 0
      %p64 = por %p62, %p63
      %p65 = scmp.ne.s32.totalorder %s54, %s57
      %p66 = scmp.eq.s32.totalorder %s23, 1
      %p67 = por %p65, %p66
      %p68 = scmp.ne.s32.totalorder %s57, %s58
      %p69 = scmp.eq.s32.totalorder %s23, 0
      %p70 = por %p68, %p69
      %p71 = scmp.ne.s32.totalorder %s57, %s58
      %p72 = scmp.eq.s32.totalorder %s24, 1
      %p73 = por %p71, %p72
      %p75 = scmp.ne.s32.totalorder %s58, %s74
      %p76 = scmp.eq.s32.totalorder %s24, 0
      %p77 = por %p75, %p76
      %s79 = sadd.s32 %s78, 1
      %p82 = scmp.eq.s32.totalorder %s18, 1
      %p83 = scmp.ne.s32.totalorder %s78, %s80
      %p84 = scmp.eq.s32.totalorder %s18, 0
      %p85 = por %p83, %p84
      %p86 = scmp.ne.s32.totalorder %s78, %s80
      %p87 = scmp.eq.s32.totalorder %s23, 1
      %p88 = por %p86, %p87
      %p89 = scmp.ne.s32.totalorder %s80, %s81
      %p90 = scmp.eq.s32.totalorder %s23, 0
      %p91 = por %p89, %p90
      %p92 = scmp.ne.s32.totalorder %s80, %s81
      %p93 = scmp.eq.s32.totalorder %s24, 1
      %p94 = por %p92, %p93
      %p96 = scmp.ne.s32.totalorder %s81, %s95
      %p97 = scmp.eq.s32.totalorder %s24, 0
      %p98 = por %p96, %p97
      %s100 = sadd.s32 %s99, 1
      %p103 = scmp.eq.s32.totalorder %s18, 1
      %p104 = scmp.ne.s32.totalorder %s99, %s101
      %p105 = scmp.eq.s32.totalorder %s18, 0
      %p106 = por %p104, %p105
      %p107 = scmp.ne.s32.totalorder %s99, %s101
      %p108 = scmp.eq.s32.totalorder %s23, 1
      %p109 = por %p107, %p108
      %p110 = scmp.ne.s32.totalorder %s101, %s102
      %p111 = scmp.eq.s32.totalorder %s23, 0
      %p112 = por %p110, %p111
      %p113 = scmp.ne.s32.totalorder %s101, %s102
      %p114 = scmp.eq.s32.totalorder %s24, 1
      %p115 = por %p113, %p114
      %p117 = scmp.ne.s32.totalorder %s102, %s116
      %p118 = scmp.eq.s32.totalorder %s24, 0
      %p119 = por %p117, %p118
      %s121 = sadd.s32 %s120, 1
      %p124 = scmp.eq.s32.totalorder %s18, 1
      %p125 = scmp.ne.s32.totalorder %s120, %s122
      %p126 = scmp.eq.s32.totalorder %s18, 0
      %p127 = por %p125, %p126
      %p128 = scmp.ne.s32.totalorder %s120, %s122
      %p129 = scmp.eq.s32.totalorder %s23, 1
      %p130 = por %p128, %p129
      %p131 = scmp.ne.s32.totalorder %s122, %s123
      %p132 = scmp.eq.s32.totalorder %s23, 0
      %p133 = por %p131, %p132
      %p134 = scmp.ne.s32.totalorder %s122, %s123
      %p135 = scmp.eq.s32.totalorder %s24, 1
      %p136 = por %p134, %p135
      %p138 = scmp.ne.s32.totalorder %s123, %s137
      %p139 = scmp.eq.s32.totalorder %s24, 0
      %p140 = por %p138, %p139
      %s142 = sadd.s32 %s141, 1
      %p145 = scmp.eq.s32.totalorder %s18, 1
      %p146 = scmp.ne.s32.totalorder %s141, %s143
      %p147 = scmp.eq.s32.totalorder %s18, 0
      %p148 = por %p146, %p147
      %p149 = scmp.ne.s32.totalorder %s141, %s143
      %p150 = scmp.eq.s32.totalorder %s23, 1
      %p151 = por %p149, %p150
      %p152 = scmp.ne.s32.totalorder %s143, %s144
      %p153 = scmp.eq.s32.totalorder %s23, 0
      %p154 = por %p152, %p153
      %p155 = scmp.ne.s32.totalorder %s143, %s144
      %p156 = scmp.eq.s32.totalorder %s24, 1
      %p157 = por %p155, %p156
      %p159 = scmp.ne.s32.totalorder %s144, %s158
      %p160 = scmp.eq.s32.totalorder %s24, 0
      %p161 = por %p159, %p160
      %s163 = sadd.s32 %s162, 1
      %p166 = scmp.eq.s32.totalorder %s18, 1
      %p167 = scmp.ne.s32.totalorder %s162, %s164
      %p168 = scmp.eq.s32.totalorder %s18, 0
      %p169 = por %p167, %p168
      %p170 = scmp.ne.s32.totalorder %s162, %s164
      %p171 = scmp.eq.s32.totalorder %s23, 1
      %p172 = por %p170, %p171
      %p173 = scmp.ne.s32.totalorder %s164, %s165
      %p174 = scmp.eq.s32.totalorder %s23, 0
      %p175 = por %p173, %p174
      %p176 = scmp.ne.s32.totalorder %s164, %s165
      %p177 = scmp.eq.s32.totalorder %s24, 1
      %p178 = por %p176, %p177
      %p180 = scmp.ne.s32.totalorder %s165, %s179
      %p181 = scmp.eq.s32.totalorder %s24, 0
      %p182 = por %p180, %p181
      %s183 = ssub.s32 %s18, %s25
      %p184 = scmp.eq.s32.totalorder %s183, 0
      %s186 = sadd.s32 %s185, 1
      %s187 = scalar_select %p184, %s185, %s186
      %p190 = pneg %p184
      %p191 = scmp.eq.s32.totalorder %s18, 1
      %p192 = por %p190, %p191
      %p193 = scmp.ne.s32.totalorder %s185, %s188
      %p194 = scmp.eq.s32.totalorder %s18, 0
      %p195 = por %p193, %p194
      %p196 = scmp.ne.s32.totalorder %s185, %s188
      %p197 = scmp.eq.s32.totalorder %s23, 1
      %p198 = por %p196, %p197
      %p199 = scmp.ne.s32.totalorder %s188, %s189
      %p200 = scmp.eq.s32.totalorder %s23, 0
      %p201 = por %p199, %p200
      %p202 = scmp.ne.s32.totalorder %s188, %s189
      %p203 = scmp.eq.s32.totalorder %s24, 1
      %p204 = por %p202, %p203
      %p206 = scmp.ne.s32.totalorder %s189, %s205
      %p207 = scmp.eq.s32.totalorder %s24, 0
      %p208 = por %p206, %p207
      %s209 = ssub.s32 %s18, %s25
      %p210 = scmp.eq.s32.totalorder %s209, 0
      %s212 = sadd.s32 %s211, 1
      %s213 = scalar_select %p210, %s211, %s212
      %p216 = pneg %p210
      %p217 = scmp.eq.s32.totalorder %s18, 1
      %p218 = por %p216, %p217
      %p219 = scmp.ne.s32.totalorder %s211, %s214
      %p220 = scmp.eq.s32.totalorder %s18, 0
      %p221 = por %p219, %p220
      %p222 = scmp.ne.s32.totalorder %s211, %s214
      %p223 = scmp.eq.s32.totalorder %s23, 1
      %p224 = por %p222, %p223
      %p225 = scmp.ne.s32.totalorder %s214, %s215
      %p226 = scmp.eq.s32.totalorder %s23, 0
      %p227 = por %p225, %p226
      %p228 = scmp.ne.s32.totalorder %s214, %s215
      %p229 = scmp.eq.s32.totalorder %s24, 1
      %p230 = por %p228, %p229
      %p232 = scmp.ne.s32.totalorder %s215, %s231
      %p233 = scmp.eq.s32.totalorder %s24, 0
      %p234 = por %p232, %p233
      %p235 = scmp.le.s32.totalorder 1, %s18
      %p236 = scmp.lt.s32.totalorder %s18, 3
      %p237 = pnand %p235, %p236
      %p238 = pneg %p237
      // Predicated region
      $region9: #{_lambda_.1} parent=5 // pred_check
        _
      $region10: #{_lambda_.1} parent=5 // pred_check_branch
        %240 = sbr.rel (%p237) target = $region12
      $region11: #{_lambda_.1} parent=5 // pred_region
        %s241 = ssub.s32 %s18, 1
        // Predicated region
        $region13: #{_lambda_.1} parent=11 // pred_check
          %p242 = pneg %p91
        $region14: #{_lambda_.1} parent=11 // pred_check_branch
          %244 = sbr.rel (%p242) target = $region16
        $region15: #{_lambda_.1} parent=11 // pred_region
          _
        $region16: #{_lambda_.1} parent=11 // pred_fallthru
          _
        // Predicated region
        $region17: #{_lambda_.1} parent=11 // pred_check
          %p245 = pneg %p112
        $region18: #{_lambda_.1} parent=11 // pred_check_branch
          %247 = sbr.rel (%p245) target = $region20
        $region19: #{_lambda_.1} parent=11 // pred_region
          %249 = vsyncadd [#allocation3], 0
          %s251 = sshll.u32 %s3, 4
          %s252 = int_to_ptr.vmem [resolvable:$true] %s251
          %254 = dma.vmem_to_smem %s252, 16, [#allocation2], [#allocation3]
        $region20: #{_lambda_.1} parent=11 // pred_fallthru
          _
        // Predicated region
        $region21: #{_lambda_.1} parent=11 // pred_check
          %p255 = pneg %p133
        $region22: #{_lambda_.1} parent=11 // pred_check_branch
          %257 = sbr.rel (%p255) target = $region24
        $region23: #{_lambda_.1} parent=11 // pred_region
          %259 = vsyncadd [#allocation5], 0
          %s261 = sshll.u32 %s4, 4
          %s262 = int_to_ptr.vmem [resolvable:$true] %s261
          %264 = dma.vmem_to_smem %s262, 16, [#allocation4], [#allocation5]
        $region24: #{_lambda_.1} parent=11 // pred_fallthru
          _
        // Predicated region
        $region25: #{_lambda_.1} parent=11 // pred_check
          %p265 = pneg %p154
        $region26: #{_lambda_.1} parent=11 // pred_check_branch
          %267 = sbr.rel (%p265) target = $region28
        $region27: #{_lambda_.1} parent=11 // pred_region
          %269 = vsyncadd [#allocation5], 0
          %s271 = sshll.u32 %s5, 4
          %s272 = int_to_ptr.vmem [resolvable:$true] %s271
          %274 = dma.vmem_to_smem %s272, 16, [#allocation6], [#allocation5]
        $region28: #{_lambda_.1} parent=11 // pred_fallthru
          _
        // Predicated region
        $region29: #{_lambda_.1} parent=11 // pred_check
          %p275 = pneg %p175
        $region30: #{_lambda_.1} parent=11 // pred_check_branch
          %277 = sbr.rel (%p275) target = $region32
        $region31: #{_lambda_.1} parent=11 // pred_region
          %279 = vsyncadd [#allocation8], 0
          %s281 = sshll.u32 %s6, 4
          %s282 = int_to_ptr.vmem [resolvable:$true] %s281
          %284 = dma.vmem_to_smem %s282, 16, [#allocation7], [#allocation8]
        $region32: #{_lambda_.1} parent=11 // pred_fallthru
          _
      $region12: #{_lambda_.1} parent=5 // pred_fallthru
        _
      %p285 = scmp.lt.s32.totalorder %s18, 2
      // Predicated region
      $region33: #{_lambda_.1} parent=5 // pred_check
        %p286 = pneg %p285
      $region34: #{_lambda_.1} parent=5 // pred_check_branch
        %288 = sbr.rel (%p286) target = $region36
      $region35: #{_lambda_.1} parent=5 // pred_region
        // Predicated region
        $region37: #{_lambda_.1} parent=35 // pred_check
          %p289 = pneg %p38
        $region38: #{_lambda_.1} parent=35 // pred_check_branch
          %291 = sbr.rel (%p289) target = $region40
        $region39: #{_lambda_.1} parent=35 // pred_region
          %s292 = smul.u32 2, %s18
          %p293 = scmp.lt.s32.totalorder %s292, 3
          %s294 = scalar_select %p293, %s292, 3
          %s295 = smul.addr %s294, 8
          %s296 = scalar_lea.vmem %s0, %s295
          %s297 = smul.u32 2, %s18
        $region40: #{_lambda_.1} parent=35 // pred_fallthru
          _
        // Predicated region
        $region41: #{_lambda_.1} parent=35 // pred_check
          %p298 = pneg %p64
        $region42: #{_lambda_.1} parent=35 // pred_check_branch
          %300 = sbr.rel (%p298) target = $region44
        $region43: #{_lambda_.1} parent=35 // pred_region
          %s301 = smul.u32 2, %s18
          %p302 = scmp.lt.s32.totalorder %s301, 3
          %s303 = scalar_select %p302, %s301, 3
          %s304 = smul.addr %s303, 8
          %s305 = scalar_lea.vmem %s1, %s304
          %s306 = smul.u32 2, %s18
        $region44: #{_lambda_.1} parent=35 // pred_fallthru
          _
      $region36: #{_lambda_.1} parent=5 // pred_fallthru
        _
      %p307 = scmp.le.s32.totalorder 1, %s18
      %p308 = scmp.lt.s32.totalorder %s18, 3
      %p309 = pnand %p307, %p308
      %p310 = pneg %p309
      // Predicated region
      $region45: #{_lambda_.1} parent=5 // pred_check
        _
      $region46: #{_lambda_.1} parent=5 // pred_check_branch
        %312 = sbr.rel (%p309) target = $region48
      $region47: #{_lambda_.1} parent=5 // pred_region
        %s313 = ssub.s32 %s18, 1
        // Predicated region
        $region49: #{_lambda_.1} parent=47 // pred_check
          %p314 = pneg %p112
        $region50: #{_lambda_.1} parent=47 // pred_check_branch
          %316 = sbr.rel (%p314) target = $region52
        $region51: #{_lambda_.1} parent=47 // pred_region
          %318 = dma.done [#allocation3], 16
        $region52: #{_lambda_.1} parent=47 // pred_fallthru
          _
        // Predicated region
        $region53: #{_lambda_.1} parent=47 // pred_check
          %p319 = pneg %p133
        $region54: #{_lambda_.1} parent=47 // pred_check_branch
          %321 = sbr.rel (%p319) target = $region56
        $region55: #{_lambda_.1} parent=47 // pred_region
          %323 = dma.done [#allocation5], 16
        $region56: #{_lambda_.1} parent=47 // pred_fallthru
          _
        // Predicated region
        $region57: #{_lambda_.1} parent=47 // pred_check
          %p324 = pneg %p154
        $region58: #{_lambda_.1} parent=47 // pred_check_branch
          %326 = sbr.rel (%p324) target = $region60
        $region59: #{_lambda_.1} parent=47 // pred_region
          %328 = dma.done [#allocation5], 16
        $region60: #{_lambda_.1} parent=47 // pred_fallthru
          _
        // Predicated region
        $region61: #{_lambda_.1} parent=47 // pred_check
          %p329 = pneg %p175
        $region62: #{_lambda_.1} parent=47 // pred_check_branch
          %331 = sbr.rel (%p329) target = $region64
        $region63: #{_lambda_.1} parent=47 // pred_region
          %333 = dma.done [#allocation8], 16
        $region64: #{_lambda_.1} parent=47 // pred_fallthru
          _
        %334 = sfence
        %s335 = smul.u32 2, %s23
        %p336 = scmp.lt.s32.totalorder %s335, 3
        %s337 = scalar_select %p336, %s335, 3
        %s338 = smul.addr %s337, 8
        %s339 = scalar_lea.vmem %s0, %s338
        %p340 = pneg %p44
        %p341 = pneg %p41
        %s342 = smul.u32 2, %s23
        %p343 = scmp.lt.s32.totalorder %s342, 3
        %s344 = scalar_select %p343, %s342, 3
        %s345 = smul.addr %s344, 8
        %s346 = scalar_lea.vmem %s1, %s345
        %p347 = pneg %p70
        %p348 = pneg %p67
        %p349 = pneg %p91
        %p350 = pneg %p88
        %p351 = pneg %p112
        %p352 = pneg %p109
        %p353 = pneg %p133
        %p354 = pneg %p130
        %p355 = pneg %p154
        %p356 = pneg %p151
        %p357 = pneg %p175
        %p358 = pneg %p172
        %p359 = pneg %p201
        %p360 = pneg %p198
        %s361 = smul.u32 2, %s23
        %p362 = scmp.lt.s32.totalorder %s361, 3
        %s363 = scalar_select %p362, %s361, 3
        %s364 = smul.addr %s363, 2
        %s365 = smul.addr %s364, 8
        %s366 = scalar_lea.vmem %s7, %s365
        %p367 = pneg %p227
        %p368 = pneg %p224
        %s369 = smul.u32 2, %s23
        %p370 = scmp.lt.s32.totalorder %s369, 3
        %s371 = scalar_select %p370, %s369, 3
        %s372 = smul.addr %s371, 2
        %s373 = smul.addr %s372, 8
        %s374 = scalar_lea.vmem %s8, %s373
        %s375 = smul.u32 2, %s23
        %p376 = scmp.lt.s32.totalorder %s375, 3
        %s377 = scalar_select %p376, %s375, 3
        %s378 = smul.addr %s377, 8
        %s379 = scalar_lea.vmem %s0, %s378
        %s380 = smul.u32 2, %s23
        %s381 = smul.u32 2, %s23
        %p382 = scmp.lt.s32.totalorder %s381, 3
        %s383 = scalar_select %p382, %s381, 3
        %s384 = smul.addr %s383, 8
        %s385 = scalar_lea.vmem %s1, %s384
        %s386 = smul.u32 2, %s23
        %s387 = smul.u32 2, %s23
        %p388 = scmp.lt.s32.totalorder %s387, 3
        %s389 = scalar_select %p388, %s387, 3
        %s390 = smul.addr %s389, 2
        %s391 = smul.addr %s390, 8
        %s392 = scalar_lea.vmem %s7, %s391
        %s393 = smul.u32 2, %s23
        %s394 = smul.u32 2, %s23
        %p395 = scmp.lt.s32.totalorder %s394, 3
        %s396 = scalar_select %p395, %s394, 3
        %s397 = smul.addr %s396, 2
        %s398 = smul.addr %s397, 8
        %s399 = scalar_lea.vmem %s8, %s398
        %s400 = smul.u32 2, %s23
        %v401 = vld [vmem:[%s2] sm:$0xff]
        %v402 = vld [vmem:[%s2 + $0x8] sm:$0xff]
        %v403 = vld [vmem:[%s2 + $0x10] sm:$0xff]
        %v404 = vld [vmem:[%s2 + $0x18] sm:$0xff]
        %v405 = vld [vmem:[%s2 + $0x20] sm:$0xff]
        %v406 = vld [vmem:[%s2 + $0x28] sm:$0xff]
        %v407 = vld [vmem:[%s2 + $0x30] sm:$0xff]
        %v408 = vld [vmem:[%s2 + $0x38] sm:$0xff]
        %v409 = vld [vmem:[%s385] sm:$0xff]
        %v410 = vld [vmem:[%s385 + $0x8] sm:$0xff]
        %vm411 = vcmask 261120
        %v413 = vsel %vm411, %v409, 0
        %v416 = vsel %vm411, %v410, 0
        %418 = vmatpush.msra.mxu0 0.0
        %419 = vmatpush.msra.mxu0 0.0
        %420 = vmatpush.msra.mxu0 0.0
        %421 = vmatpush.msra.mxu0 0.0
        %422 = vmatpush.msra.mxu0 0.0
        %423 = vmatpush.msra.mxu0 0.0
        %424 = vmatpush.msra.mxu0 0.0
        %425 = vmatpush.msra.mxu0 0.0
        %426 = vmatpush.msra.mxu0 0.0
        %427 = vmatpush.msra.mxu0 0.0
        %428 = vmatpush.msra.mxu0 0.0
        %429 = vmatpush.msra.mxu0 0.0
        %v430 = vand.u32 %v407, 4294901760
        %431 = vmatpush.msra.mxu0 %v430
        %v432 = vand.u32 %v405, 4294901760
        %433 = vmatpush.msra.mxu0 %v432
        %v434 = vand.u32 %v403, 4294901760
        %435 = vmatpush.msra.mxu0 %v434
        %v436 = vand.u32 %v401, 4294901760
        %437 = vmatpush.msra.mxu0 %v436
        %v438 = vand.u32 %v413, 4294901760
        %v439 = vsub.f32 %v413, %v438
        %v440 = vand.u32 %v439, 4294901760
        %v441 = vsub.f32 %v439, %v440
        %v442 = vand.u32 %v441, 4294901760
        %443 = vmatmul.f32.gmra.mxu0 %v442
        %v444 = vpop.f32.mrf.mxu0
        %v445 = vadd.f32 0.0, %v444
        %v446 = vand.u32 %v416, 4294901760
        %v447 = vsub.f32 %v416, %v446
        %v448 = vand.u32 %v447, 4294901760
        %v449 = vsub.f32 %v447, %v448
        %v450 = vand.u32 %v449, 4294901760
        %451 = vmatmul.f32.gmra.mxu0 %v450
        %v452 = vpop.f32.mrf.mxu0
        %v453 = vadd.f32 0.0, %v452
        %454 = vdwg.mxu0
        %455 = vmatpush.msra.mxu0 0.0
        %456 = vmatpush.msra.mxu0 0.0
        %457 = vmatpush.msra.mxu0 0.0
        %458 = vmatpush.msra.mxu0 0.0
        %459 = vmatpush.msra.mxu0 0.0
        %460 = vmatpush.msra.mxu0 0.0
        %461 = vmatpush.msra.mxu0 0.0
        %462 = vmatpush.msra.mxu0 0.0
        %463 = vmatpush.msra.mxu0 0.0
        %464 = vmatpush.msra.mxu0 0.0
        %465 = vmatpush.msra.mxu0 0.0
        %466 = vmatpush.msra.mxu0 0.0
        %v467 = vand.u32 %v407, 4294901760
        %v468 = vsub.f32 %v407, %v467
        %v469 = vand.u32 %v468, 4294901760
        %v470 = vsub.f32 %v468, %v469
        %v471 = vand.u32 %v470, 4294901760
        %472 = vmatpush.msra.mxu0 %v471
        %v473 = vand.u32 %v405, 4294901760
        %v474 = vsub.f32 %v405, %v473
        %v475 = vand.u32 %v474, 4294901760
        %v476 = vsub.f32 %v474, %v475
        %v477 = vand.u32 %v476, 4294901760
        %478 = vmatpush.msra.mxu0 %v477
        %v479 = vand.u32 %v403, 4294901760
        %v480 = vsub.f32 %v403, %v479
        %v481 = vand.u32 %v480, 4294901760
        %v482 = vsub.f32 %v480, %v481
        %v483 = vand.u32 %v482, 4294901760
        %484 = vmatpush.msra.mxu0 %v483
        %v485 = vand.u32 %v401, 4294901760
        %v486 = vsub.f32 %v401, %v485
        %v487 = vand.u32 %v486, 4294901760
        %v488 = vsub.f32 %v486, %v487
        %v489 = vand.u32 %v488, 4294901760
        %490 = vmatpush.msra.mxu0 %v489
        %v491 = vand.u32 %v413, 4294901760
        %492 = vmatmul.f32.gmra.mxu0 %v491
        %v493 = vpop.f32.mrf.mxu0
        %v494 = vadd.f32 %v445, %v493
        %v495 = vand.u32 %v416, 4294901760
        %496 = vmatmul.f32.gmra.mxu0 %v495
        %v497 = vpop.f32.mrf.mxu0
        %v498 = vadd.f32 %v453, %v497
        %499 = vdwg.mxu0
        %500 = vmatpush.msra.mxu0 0.0
        %501 = vmatpush.msra.mxu0 0.0
        %502 = vmatpush.msra.mxu0 0.0
        %503 = vmatpush.msra.mxu0 0.0
        %504 = vmatpush.msra.mxu0 0.0
        %505 = vmatpush.msra.mxu0 0.0
        %506 = vmatpush.msra.mxu0 0.0
        %507 = vmatpush.msra.mxu0 0.0
        %508 = vmatpush.msra.mxu0 0.0
        %509 = vmatpush.msra.mxu0 0.0
        %510 = vmatpush.msra.mxu0 0.0
        %511 = vmatpush.msra.mxu0 0.0
        %v512 = vand.u32 %v407, 4294901760
        %v513 = vsub.f32 %v407, %v512
        %514 = vmatpush.msra.mxu0 %v513
        %v515 = vand.u32 %v405, 4294901760
        %v516 = vsub.f32 %v405, %v515
        %517 = vmatpush.msra.mxu0 %v516
        %v518 = vand.u32 %v403, 4294901760
        %v519 = vsub.f32 %v403, %v518
        %520 = vmatpush.msra.mxu0 %v519
        %v521 = vand.u32 %v401, 4294901760
        %v522 = vsub.f32 %v401, %v521
        %523 = vmatpush.msra.mxu0 %v522
        %v524 = vand.u32 %v413, 4294901760
        %v525 = vsub.f32 %v413, %v524
        %526 = vmatmul.f32.gmra.mxu0 %v525
        %v527 = vpop.f32.mrf.mxu0
        %v528 = vadd.f32 %v494, %v527
        %v529 = vand.u32 %v416, 4294901760
        %v530 = vsub.f32 %v416, %v529
        %531 = vmatmul.f32.gmra.mxu0 %v530
        %v532 = vpop.f32.mrf.mxu0
        %v533 = vadd.f32 %v498, %v532
        %534 = vdwg.mxu0
        %535 = vmatpush.msra.mxu0 0.0
        %536 = vmatpush.msra.mxu0 0.0
        %537 = vmatpush.msra.mxu0 0.0
        %538 = vmatpush.msra.mxu0 0.0
        %539 = vmatpush.msra.mxu0 0.0
        %540 = vmatpush.msra.mxu0 0.0
        %541 = vmatpush.msra.mxu0 0.0
        %542 = vmatpush.msra.mxu0 0.0
        %543 = vmatpush.msra.mxu0 0.0
        %544 = vmatpush.msra.mxu0 0.0
        %545 = vmatpush.msra.mxu0 0.0
        %546 = vmatpush.msra.mxu0 0.0
        %v547 = vand.u32 %v407, 4294901760
        %548 = vmatpush.msra.mxu0 %v547
        %v549 = vand.u32 %v405, 4294901760
        %550 = vmatpush.msra.mxu0 %v549
        %v551 = vand.u32 %v403, 4294901760
        %552 = vmatpush.msra.mxu0 %v551
        %v553 = vand.u32 %v401, 4294901760
        %554 = vmatpush.msra.mxu0 %v553
        %v555 = vand.u32 %v413, 4294901760
        %v556 = vsub.f32 %v413, %v555
        %v557 = vand.u32 %v556, 4294901760
        %558 = vmatmul.f32.gmra.mxu0 %v557
        %v559 = vpop.f32.mrf.mxu0
        %v560 = vadd.f32 %v528, %v559
        %v561 = vand.u32 %v416, 4294901760
        %v562 = vsub.f32 %v416, %v561
        %v563 = vand.u32 %v562, 4294901760
        %564 = vmatmul.f32.gmra.mxu0 %v563
        %v565 = vpop.f32.mrf.mxu0
        %v566 = vadd.f32 %v533, %v565
        %567 = vdwg.mxu0
        %568 = vmatpush.msra.mxu0 0.0
        %569 = vmatpush.msra.mxu0 0.0
        %570 = vmatpush.msra.mxu0 0.0
        %571 = vmatpush.msra.mxu0 0.0
        %572 = vmatpush.msra.mxu0 0.0
        %573 = vmatpush.msra.mxu0 0.0
        %574 = vmatpush.msra.mxu0 0.0
        %575 = vmatpush.msra.mxu0 0.0
        %576 = vmatpush.msra.mxu0 0.0
        %577 = vmatpush.msra.mxu0 0.0
        %578 = vmatpush.msra.mxu0 0.0
        %579 = vmatpush.msra.mxu0 0.0
        %v580 = vand.u32 %v407, 4294901760
        %v581 = vsub.f32 %v407, %v580
        %v582 = vand.u32 %v581, 4294901760
        %583 = vmatpush.msra.mxu0 %v582
        %v584 = vand.u32 %v405, 4294901760
        %v585 = vsub.f32 %v405, %v584
        %v586 = vand.u32 %v585, 4294901760
        %587 = vmatpush.msra.mxu0 %v586
        %v588 = vand.u32 %v403, 4294901760
        %v589 = vsub.f32 %v403, %v588
        %v590 = vand.u32 %v589, 4294901760
        %591 = vmatpush.msra.mxu0 %v590
        %v592 = vand.u32 %v401, 4294901760
        %v593 = vsub.f32 %v401, %v592
        %v594 = vand.u32 %v593, 4294901760
        %595 = vmatpush.msra.mxu0 %v594
        %v596 = vand.u32 %v413, 4294901760
        %597 = vmatmul.f32.gmra.mxu0 %v596
        %v598 = vpop.f32.mrf.mxu0
        %v599 = vadd.f32 %v560, %v598
        %v600 = vand.u32 %v416, 4294901760
        %601 = vmatmul.f32.gmra.mxu0 %v600
        %v602 = vpop.f32.mrf.mxu0
        %v603 = vadd.f32 %v566, %v602
        %604 = vdwg.mxu0
        %605 = vmatpush.msra.mxu0 0.0
        %606 = vmatpush.msra.mxu0 0.0
        %607 = vmatpush.msra.mxu0 0.0
        %608 = vmatpush.msra.mxu0 0.0
        %609 = vmatpush.msra.mxu0 0.0
        %610 = vmatpush.msra.mxu0 0.0
        %611 = vmatpush.msra.mxu0 0.0
        %612 = vmatpush.msra.mxu0 0.0
        %613 = vmatpush.msra.mxu0 0.0
        %614 = vmatpush.msra.mxu0 0.0
        %615 = vmatpush.msra.mxu0 0.0
        %616 = vmatpush.msra.mxu0 0.0
        %v617 = vand.u32 %v407, 4294901760
        %618 = vmatpush.msra.mxu0 %v617
        %v619 = vand.u32 %v405, 4294901760
        %620 = vmatpush.msra.mxu0 %v619
        %v621 = vand.u32 %v403, 4294901760
        %622 = vmatpush.msra.mxu0 %v621
        %v623 = vand.u32 %v401, 4294901760
        %624 = vmatpush.msra.mxu0 %v623
        %v625 = vand.u32 %v413, 4294901760
        %626 = vmatmul.f32.gmra.mxu0 %v625
        %v627 = vpop.f32.mrf.mxu0
        %v628 = vadd.f32 %v599, %v627
        %v629 = vand.u32 %v416, 4294901760
        %630 = vmatmul.f32.gmra.mxu0 %v629
        %v631 = vpop.f32.mrf.mxu0
        %v632 = vadd.f32 %v603, %v631
        %633 = vdwg.mxu0
        %634 = vmatpush.msra.mxu0 0.0
        %635 = vmatpush.msra.mxu0 0.0
        %636 = vmatpush.msra.mxu0 0.0
        %637 = vmatpush.msra.mxu0 0.0
        %638 = vmatpush.msra.mxu0 0.0
        %639 = vmatpush.msra.mxu0 0.0
        %640 = vmatpush.msra.mxu0 0.0
        %641 = vmatpush.msra.mxu0 0.0
        %642 = vmatpush.msra.mxu0 0.0
        %643 = vmatpush.msra.mxu0 0.0
        %644 = vmatpush.msra.mxu0 0.0
        %645 = vmatpush.msra.mxu0 0.0
        %v646 = vand.u32 %v408, 4294901760
        %647 = vmatpush.msra.mxu0 %v646
        %v648 = vand.u32 %v406, 4294901760
        %649 = vmatpush.msra.mxu0 %v648
        %v650 = vand.u32 %v404, 4294901760
        %651 = vmatpush.msra.mxu0 %v650
        %v652 = vand.u32 %v402, 4294901760
        %653 = vmatpush.msra.mxu0 %v652
        %v654 = vand.u32 %v413, 4294901760
        %v655 = vsub.f32 %v413, %v654
        %v656 = vand.u32 %v655, 4294901760
        %v657 = vsub.f32 %v655, %v656
        %v658 = vand.u32 %v657, 4294901760
        %659 = vmatmul.f32.gmra.mxu0 %v658
        %v660 = vpop.f32.mrf.mxu0
        %v661 = vadd.f32 0.0, %v660
        %v662 = vand.u32 %v416, 4294901760
        %v663 = vsub.f32 %v416, %v662
        %v664 = vand.u32 %v663, 4294901760
        %v665 = vsub.f32 %v663, %v664
        %v666 = vand.u32 %v665, 4294901760
        %667 = vmatmul.f32.gmra.mxu0 %v666
        %v668 = vpop.f32.mrf.mxu0
        %v669 = vadd.f32 0.0, %v668
        %670 = vdwg.mxu0
        %671 = vmatpush.msra.mxu0 0.0
        %672 = vmatpush.msra.mxu0 0.0
        %673 = vmatpush.msra.mxu0 0.0
        %674 = vmatpush.msra.mxu0 0.0
        %675 = vmatpush.msra.mxu0 0.0
        %676 = vmatpush.msra.mxu0 0.0
        %677 = vmatpush.msra.mxu0 0.0
        %678 = vmatpush.msra.mxu0 0.0
        %679 = vmatpush.msra.mxu0 0.0
        %680 = vmatpush.msra.mxu0 0.0
        %681 = vmatpush.msra.mxu0 0.0
        %682 = vmatpush.msra.mxu0 0.0
        %v683 = vand.u32 %v408, 4294901760
        %v684 = vsub.f32 %v408, %v683
        %v685 = vand.u32 %v684, 4294901760
        %v686 = vsub.f32 %v684, %v685
        %v687 = vand.u32 %v686, 4294901760
        %688 = vmatpush.msra.mxu0 %v687
        %v689 = vand.u32 %v406, 4294901760
        %v690 = vsub.f32 %v406, %v689
        %v691 = vand.u32 %v690, 4294901760
        %v692 = vsub.f32 %v690, %v691
        %v693 = vand.u32 %v692, 4294901760
        %694 = vmatpush.msra.mxu0 %v693
        %v695 = vand.u32 %v404, 4294901760
        %v696 = vsub.f32 %v404, %v695
        %v697 = vand.u32 %v696, 4294901760
        %v698 = vsub.f32 %v696, %v697
        %v699 = vand.u32 %v698, 4294901760
        %700 = vmatpush.msra.mxu0 %v699
        %v701 = vand.u32 %v402, 4294901760
        %v702 = vsub.f32 %v402, %v701
        %v703 = vand.u32 %v702, 4294901760
        %v704 = vsub.f32 %v702, %v703
        %v705 = vand.u32 %v704, 4294901760
        %706 = vmatpush.msra.mxu0 %v705
        %v707 = vand.u32 %v413, 4294901760
        %708 = vmatmul.f32.gmra.mxu0 %v707
        %v709 = vpop.f32.mrf.mxu0
        %v710 = vadd.f32 %v661, %v709
        %v711 = vand.u32 %v416, 4294901760
        %712 = vmatmul.f32.gmra.mxu0 %v711
        %v713 = vpop.f32.mrf.mxu0
        %v714 = vadd.f32 %v669, %v713
        %715 = vdwg.mxu0
        %716 = vmatpush.msra.mxu0 0.0
        %717 = vmatpush.msra.mxu0 0.0
        %718 = vmatpush.msra.mxu0 0.0
        %719 = vmatpush.msra.mxu0 0.0
        %720 = vmatpush.msra.mxu0 0.0
        %721 = vmatpush.msra.mxu0 0.0
        %722 = vmatpush.msra.mxu0 0.0
        %723 = vmatpush.msra.mxu0 0.0
        %724 = vmatpush.msra.mxu0 0.0
        %725 = vmatpush.msra.mxu0 0.0
        %726 = vmatpush.msra.mxu0 0.0
        %727 = vmatpush.msra.mxu0 0.0
        %v728 = vand.u32 %v408, 4294901760
        %v729 = vsub.f32 %v408, %v728
        %730 = vmatpush.msra.mxu0 %v729
        %v731 = vand.u32 %v406, 4294901760
        %v732 = vsub.f32 %v406, %v731
        %733 = vmatpush.msra.mxu0 %v732
        %v734 = vand.u32 %v404, 4294901760
        %v735 = vsub.f32 %v404, %v734
        %736 = vmatpush.msra.mxu0 %v735
        %v737 = vand.u32 %v402, 4294901760
        %v738 = vsub.f32 %v402, %v737
        %739 = vmatpush.msra.mxu0 %v738
        %v740 = vand.u32 %v413, 4294901760
        %v741 = vsub.f32 %v413, %v740
        %742 = vmatmul.f32.gmra.mxu0 %v741
        %v743 = vpop.f32.mrf.mxu0
        %v744 = vadd.f32 %v710, %v743
        %v745 = vand.u32 %v416, 4294901760
        %v746 = vsub.f32 %v416, %v745
        %747 = vmatmul.f32.gmra.mxu0 %v746
        %v748 = vpop.f32.mrf.mxu0
        %v749 = vadd.f32 %v714, %v748
        %750 = vdwg.mxu0
        %751 = vmatpush.msra.mxu0 0.0
        %752 = vmatpush.msra.mxu0 0.0
        %753 = vmatpush.msra.mxu0 0.0
        %754 = vmatpush.msra.mxu0 0.0
        %755 = vmatpush.msra.mxu0 0.0
        %756 = vmatpush.msra.mxu0 0.0
        %757 = vmatpush.msra.mxu0 0.0
        %758 = vmatpush.msra.mxu0 0.0
        %759 = vmatpush.msra.mxu0 0.0
        %760 = vmatpush.msra.mxu0 0.0
        %761 = vmatpush.msra.mxu0 0.0
        %762 = vmatpush.msra.mxu0 0.0
        %v763 = vand.u32 %v408, 4294901760
        %764 = vmatpush.msra.mxu0 %v763
        %v765 = vand.u32 %v406, 4294901760
        %766 = vmatpush.msra.mxu0 %v765
        %v767 = vand.u32 %v404, 4294901760
        %768 = vmatpush.msra.mxu0 %v767
        %v769 = vand.u32 %v402, 4294901760
        %770 = vmatpush.msra.mxu0 %v769
        %v771 = vand.u32 %v413, 4294901760
        %v772 = vsub.f32 %v413, %v771
        %v773 = vand.u32 %v772, 4294901760
        %774 = vmatmul.f32.gmra.mxu0 %v773
        %v775 = vpop.f32.mrf.mxu0
        %v776 = vadd.f32 %v744, %v775
        %v777 = vand.u32 %v416, 4294901760
        %v778 = vsub.f32 %v416, %v777
        %v779 = vand.u32 %v778, 4294901760
        %780 = vmatmul.f32.gmra.mxu0 %v779
        %v781 = vpop.f32.mrf.mxu0
        %v782 = vadd.f32 %v749, %v781
        %783 = vdwg.mxu0
        %784 = vmatpush.msra.mxu0 0.0
        %785 = vmatpush.msra.mxu0 0.0
        %786 = vmatpush.msra.mxu0 0.0
        %787 = vmatpush.msra.mxu0 0.0
        %788 = vmatpush.msra.mxu0 0.0
        %789 = vmatpush.msra.mxu0 0.0
        %790 = vmatpush.msra.mxu0 0.0
        %791 = vmatpush.msra.mxu0 0.0
        %792 = vmatpush.msra.mxu0 0.0
        %793 = vmatpush.msra.mxu0 0.0
        %794 = vmatpush.msra.mxu0 0.0
        %795 = vmatpush.msra.mxu0 0.0
        %v796 = vand.u32 %v408, 4294901760
        %v797 = vsub.f32 %v408, %v796
        %v798 = vand.u32 %v797, 4294901760
        %799 = vmatpush.msra.mxu0 %v798
        %v800 = vand.u32 %v406, 4294901760
        %v801 = vsub.f32 %v406, %v800
        %v802 = vand.u32 %v801, 4294901760
        %803 = vmatpush.msra.mxu0 %v802
        %v804 = vand.u32 %v404, 4294901760
        %v805 = vsub.f32 %v404, %v804
        %v806 = vand.u32 %v805, 4294901760
        %807 = vmatpush.msra.mxu0 %v806
        %v808 = vand.u32 %v402, 4294901760
        %v809 = vsub.f32 %v402, %v808
        %v810 = vand.u32 %v809, 4294901760
        %811 = vmatpush.msra.mxu0 %v810
        %v812 = vand.u32 %v413, 4294901760
        %813 = vmatmul.f32.gmra.mxu0 %v812
        %v814 = vpop.f32.mrf.mxu0
        %v815 = vadd.f32 %v776, %v814
        %v816 = vand.u32 %v416, 4294901760
        %817 = vmatmul.f32.gmra.mxu0 %v816
        %v818 = vpop.f32.mrf.mxu0
        %v819 = vadd.f32 %v782, %v818
        %820 = vdwg.mxu0
        %821 = vmatpush.msra.mxu0 0.0
        %822 = vmatpush.msra.mxu0 0.0
        %823 = vmatpush.msra.mxu0 0.0
        %824 = vmatpush.msra.mxu0 0.0
        %825 = vmatpush.msra.mxu0 0.0
        %826 = vmatpush.msra.mxu0 0.0
        %827 = vmatpush.msra.mxu0 0.0
        %828 = vmatpush.msra.mxu0 0.0
        %829 = vmatpush.msra.mxu0 0.0
        %830 = vmatpush.msra.mxu0 0.0
        %831 = vmatpush.msra.mxu0 0.0
        %832 = vmatpush.msra.mxu0 0.0
        %v833 = vand.u32 %v408, 4294901760
        %834 = vmatpush.msra.mxu0 %v833
        %v835 = vand.u32 %v406, 4294901760
        %836 = vmatpush.msra.mxu0 %v835
        %v837 = vand.u32 %v404, 4294901760
        %838 = vmatpush.msra.mxu0 %v837
        %v839 = vand.u32 %v402, 4294901760
        %840 = vmatpush.msra.mxu0 %v839
        %v841 = vand.u32 %v413, 4294901760
        %842 = vmatmul.f32.gmra.mxu0 %v841
        %v843 = vpop.f32.mrf.mxu0
        %v844 = vadd.f32 %v815, %v843
        %v845 = vand.u32 %v416, 4294901760
        %846 = vmatmul.f32.gmra.mxu0 %v845
        %v847 = vpop.f32.mrf.mxu0
        %v848 = vadd.f32 %v819, %v847
        %849 = vdwg.mxu0
        %v850 = vmul.f32 %v628, %v628
        %v851 = vmul.f32 %v632, %v632
        %v852 = vmul.f32 %v844, %v844
        %v853 = vmul.f32 %v848, %v848
        %v854 = vadd.f32 %v850, %v852
        %v855 = vadd.f32 %v851, %v853
        %vm856 = vcmp.gt.f32.partialorder %v854, 0.0
        %vm857 = vcmp.gt.f32.partialorder %v855, 0.0
        %v858 = vrsqrt.pop %v854
        %v859 = vmul.f32 %v858, %v854
        %v860 = vmul.f32 %v859, %v858
        %v861 = vmul.f32 0.5, %v860
        %v862 = vsub.f32 1.5, %v861
        %v863 = vmul.f32 %v858, %v862
        %v864 = vmul.f32 %v854, %v863
        %vm865 = vcmp.eq.f32.partialorder %v854, inf
        %v866 = vsel %vm865, %v854, %v864
        %vm867 = vcmp.eq.f32.partialorder %v854, 0.0
        %v868 = vand.u32 %v854, 2147483648
        %v869 = vsel %vm867, %v868, %v866
        %v870 = vrsqrt.pop %v855
        %v871 = vmul.f32 %v870, %v855
        %v872 = vmul.f32 %v871, %v870
        %v873 = vmul.f32 0.5, %v872
        %v874 = vsub.f32 1.5, %v873
        %v875 = vmul.f32 %v870, %v874
        %v876 = vmul.f32 %v855, %v875
        %vm877 = vcmp.eq.f32.partialorder %v855, inf
        %v878 = vsel %vm877, %v855, %v876
        %vm879 = vcmp.eq.f32.partialorder %v855, 0.0
        %v880 = vand.u32 %v855, 2147483648
        %v881 = vsel %vm879, %v880, %v878
        %v882 = vrsqrt.pop %v869
        %v883 = vmul.f32 %v882, %v869
        %v884 = vmul.f32 %v883, %v882
        %v885 = vmul.f32 0.5, %v884
        %v886 = vsub.f32 1.5, %v885
        %v887 = vmul.f32 %v882, %v886
        %vm888 = vweird.f32 %v869
        %vm889 = vweird.f32 %v882
        %vm890 = vmor %vm888, %vm889
        %v891 = vsel %vm890, %v882, %v887
        %v892 = vrsqrt.pop %v881
        %v893 = vmul.f32 %v892, %v881
        %v894 = vmul.f32 %v893, %v892
        %v895 = vmul.f32 0.5, %v894
        %v896 = vsub.f32 1.5, %v895
        %v897 = vmul.f32 %v892, %v896
        %vm898 = vweird.f32 %v881
        %vm899 = vweird.f32 %v892
        %vm900 = vmor %vm898, %vm899
        %v901 = vsel %vm900, %v892, %v897
        %v902 = vsel %vm856, %v891, 0.0
        %v903 = vsel %vm857, %v901, 0.0
        %v904 = vmul.f32 %v628, %v902
        %v905 = vmul.f32 %v632, %v903
        %v906 = vmul.f32 %v844, %v902
        %v907 = vmul.f32 %v848, %v903
        %908 = vst [vmem:[%s392] sm:$0xff] %v904
        %909 = vst [vmem:[%s392 + $0x10] sm:$0xff] %v905
        %910 = vst [vmem:[%s392 + $0x8] sm:$0xff] %v906
        %911 = vst [vmem:[%s392 + $0x18] sm:$0xff] %v907
        %v912 = vld [vmem:[%s379] sm:$0xff]
        %v913 = vld [vmem:[%s379 + $0x8] sm:$0xff]
        %v915 = vsel %vm411, %v912, 0
        %v918 = vsel %vm411, %v913, 0
        %920 = vmatpush.msra.mxu0 0.0
        %921 = vmatpush.msra.mxu0 0.0
        %922 = vmatpush.msra.mxu0 0.0
        %923 = vmatpush.msra.mxu0 0.0
        %924 = vmatpush.msra.mxu0 0.0
        %925 = vmatpush.msra.mxu0 0.0
        %926 = vmatpush.msra.mxu0 0.0
        %927 = vmatpush.msra.mxu0 0.0
        %928 = vmatpush.msra.mxu0 0.0
        %929 = vmatpush.msra.mxu0 0.0
        %930 = vmatpush.msra.mxu0 0.0
        %931 = vmatpush.msra.mxu0 0.0
        %v932 = vand.u32 %v407, 4294901760
        %933 = vmatpush.msra.mxu0 %v932
        %v934 = vand.u32 %v405, 4294901760
        %935 = vmatpush.msra.mxu0 %v934
        %v936 = vand.u32 %v403, 4294901760
        %937 = vmatpush.msra.mxu0 %v936
        %v938 = vand.u32 %v401, 4294901760
        %939 = vmatpush.msra.mxu0 %v938
        %v940 = vand.u32 %v915, 4294901760
        %v941 = vsub.f32 %v915, %v940
        %v942 = vand.u32 %v941, 4294901760
        %v943 = vsub.f32 %v941, %v942
        %v944 = vand.u32 %v943, 4294901760
        %945 = vmatmul.f32.gmra.mxu0 %v944
        %v946 = vpop.f32.mrf.mxu0
        %v947 = vadd.f32 0.0, %v946
        %v948 = vand.u32 %v918, 4294901760
        %v949 = vsub.f32 %v918, %v948
        %v950 = vand.u32 %v949, 4294901760
        %v951 = vsub.f32 %v949, %v950
        %v952 = vand.u32 %v951, 4294901760
        %953 = vmatmul.f32.gmra.mxu0 %v952
        %v954 = vpop.f32.mrf.mxu0
        %v955 = vadd.f32 0.0, %v954
        %956 = vdwg.mxu0
        %957 = vmatpush.msra.mxu0 0.0
        %958 = vmatpush.msra.mxu0 0.0
        %959 = vmatpush.msra.mxu0 0.0
        %960 = vmatpush.msra.mxu0 0.0
        %961 = vmatpush.msra.mxu0 0.0
        %962 = vmatpush.msra.mxu0 0.0
        %963 = vmatpush.msra.mxu0 0.0
        %964 = vmatpush.msra.mxu0 0.0
        %965 = vmatpush.msra.mxu0 0.0
        %966 = vmatpush.msra.mxu0 0.0
        %967 = vmatpush.msra.mxu0 0.0
        %968 = vmatpush.msra.mxu0 0.0
        %v969 = vand.u32 %v407, 4294901760
        %v970 = vsub.f32 %v407, %v969
        %v971 = vand.u32 %v970, 4294901760
        %v972 = vsub.f32 %v970, %v971
        %v973 = vand.u32 %v972, 4294901760
        %974 = vmatpush.msra.mxu0 %v973
        %v975 = vand.u32 %v405, 4294901760
        %v976 = vsub.f32 %v405, %v975
        %v977 = vand.u32 %v976, 4294901760
        %v978 = vsub.f32 %v976, %v977
        %v979 = vand.u32 %v978, 4294901760
        %980 = vmatpush.msra.mxu0 %v979
        %v981 = vand.u32 %v403, 4294901760
        %v982 = vsub.f32 %v403, %v981
        %v983 = vand.u32 %v982, 4294901760
        %v984 = vsub.f32 %v982, %v983
        %v985 = vand.u32 %v984, 4294901760
        %986 = vmatpush.msra.mxu0 %v985
        %v987 = vand.u32 %v401, 4294901760
        %v988 = vsub.f32 %v401, %v987
        %v989 = vand.u32 %v988, 4294901760
        %v990 = vsub.f32 %v988, %v989
        %v991 = vand.u32 %v990, 4294901760
        %992 = vmatpush.msra.mxu0 %v991
        %v993 = vand.u32 %v915, 4294901760
        %994 = vmatmul.f32.gmra.mxu0 %v993
        %v995 = vpop.f32.mrf.mxu0
        %v996 = vadd.f32 %v947, %v995
        %v997 = vand.u32 %v918, 4294901760
        %998 = vmatmul.f32.gmra.mxu0 %v997
        %v999 = vpop.f32.mrf.mxu0
        %v1000 = vadd.f32 %v955, %v999
        %1001 = vdwg.mxu0
        %1002 = vmatpush.msra.mxu0 0.0
        %1003 = vmatpush.msra.mxu0 0.0
        %1004 = vmatpush.msra.mxu0 0.0
        %1005 = vmatpush.msra.mxu0 0.0
        %1006 = vmatpush.msra.mxu0 0.0
        %1007 = vmatpush.msra.mxu0 0.0
        %1008 = vmatpush.msra.mxu0 0.0
        %1009 = vmatpush.msra.mxu0 0.0
        %1010 = vmatpush.msra.mxu0 0.0
        %1011 = vmatpush.msra.mxu0 0.0
        %1012 = vmatpush.msra.mxu0 0.0
        %1013 = vmatpush.msra.mxu0 0.0
        %v1014 = vand.u32 %v407, 4294901760
        %v1015 = vsub.f32 %v407, %v1014
        %1016 = vmatpush.msra.mxu0 %v1015
        %v1017 = vand.u32 %v405, 4294901760
        %v1018 = vsub.f32 %v405, %v1017
        %1019 = vmatpush.msra.mxu0 %v1018
        %v1020 = vand.u32 %v403, 4294901760
        %v1021 = vsub.f32 %v403, %v1020
        %1022 = vmatpush.msra.mxu0 %v1021
        %v1023 = vand.u32 %v401, 4294901760
        %v1024 = vsub.f32 %v401, %v1023
        %1025 = vmatpush.msra.mxu0 %v1024
        %v1026 = vand.u32 %v915, 4294901760
        %v1027 = vsub.f32 %v915, %v1026
        %1028 = vmatmul.f32.gmra.mxu0 %v1027
        %v1029 = vpop.f32.mrf.mxu0
        %v1030 = vadd.f32 %v996, %v1029
        %v1031 = vand.u32 %v918, 4294901760
        %v1032 = vsub.f32 %v918, %v1031
        %1033 = vmatmul.f32.gmra.mxu0 %v1032
        %v1034 = vpop.f32.mrf.mxu0
        %v1035 = vadd.f32 %v1000, %v1034
        %1036 = vdwg.mxu0
        %1037 = vmatpush.msra.mxu0 0.0
        %1038 = vmatpush.msra.mxu0 0.0
        %1039 = vmatpush.msra.mxu0 0.0
        %1040 = vmatpush.msra.mxu0 0.0
        %1041 = vmatpush.msra.mxu0 0.0
        %1042 = vmatpush.msra.mxu0 0.0
        %1043 = vmatpush.msra.mxu0 0.0
        %1044 = vmatpush.msra.mxu0 0.0
        %1045 = vmatpush.msra.mxu0 0.0
        %1046 = vmatpush.msra.mxu0 0.0
        %1047 = vmatpush.msra.mxu0 0.0
        %1048 = vmatpush.msra.mxu0 0.0
        %v1049 = vand.u32 %v407, 4294901760
        %1050 = vmatpush.msra.mxu0 %v1049
        %v1051 = vand.u32 %v405, 4294901760
        %1052 = vmatpush.msra.mxu0 %v1051
        %v1053 = vand.u32 %v403, 4294901760
        %1054 = vmatpush.msra.mxu0 %v1053
        %v1055 = vand.u32 %v401, 4294901760
        %1056 = vmatpush.msra.mxu0 %v1055
        %v1057 = vand.u32 %v915, 4294901760
        %v1058 = vsub.f32 %v915, %v1057
        %v1059 = vand.u32 %v1058, 4294901760
        %1060 = vmatmul.f32.gmra.mxu0 %v1059
        %v1061 = vpop.f32.mrf.mxu0
        %v1062 = vadd.f32 %v1030, %v1061
        %v1063 = vand.u32 %v918, 4294901760
        %v1064 = vsub.f32 %v918, %v1063
        %v1065 = vand.u32 %v1064, 4294901760
        %1066 = vmatmul.f32.gmra.mxu0 %v1065
        %v1067 = vpop.f32.mrf.mxu0
        %v1068 = vadd.f32 %v1035, %v1067
        %1069 = vdwg.mxu0
        %1070 = vmatpush.msra.mxu0 0.0
        %1071 = vmatpush.msra.mxu0 0.0
        %1072 = vmatpush.msra.mxu0 0.0
        %1073 = vmatpush.msra.mxu0 0.0
        %1074 = vmatpush.msra.mxu0 0.0
        %1075 = vmatpush.msra.mxu0 0.0
        %1076 = vmatpush.msra.mxu0 0.0
        %1077 = vmatpush.msra.mxu0 0.0
        %1078 = vmatpush.msra.mxu0 0.0
        %1079 = vmatpush.msra.mxu0 0.0
        %1080 = vmatpush.msra.mxu0 0.0
        %1081 = vmatpush.msra.mxu0 0.0
        %v1082 = vand.u32 %v407, 4294901760
        %v1083 = vsub.f32 %v407, %v1082
        %v1084 = vand.u32 %v1083, 4294901760
        %1085 = vmatpush.msra.mxu0 %v1084
        %v1086 = vand.u32 %v405, 4294901760
        %v1087 = vsub.f32 %v405, %v1086
        %v1088 = vand.u32 %v1087, 4294901760
        %1089 = vmatpush.msra.mxu0 %v1088
        %v1090 = vand.u32 %v403, 4294901760
        %v1091 = vsub.f32 %v403, %v1090
        %v1092 = vand.u32 %v1091, 4294901760
        %1093 = vmatpush.msra.mxu0 %v1092
        %v1094 = vand.u32 %v401, 4294901760
        %v1095 = vsub.f32 %v401, %v1094
        %v1096 = vand.u32 %v1095, 4294901760
        %1097 = vmatpush.msra.mxu0 %v1096
        %v1098 = vand.u32 %v915, 4294901760
        %1099 = vmatmul.f32.gmra.mxu0 %v1098
        %v1100 = vpop.f32.mrf.mxu0
        %v1101 = vadd.f32 %v1062, %v1100
        %v1102 = vand.u32 %v918, 4294901760
        %1103 = vmatmul.f32.gmra.mxu0 %v1102
        %v1104 = vpop.f32.mrf.mxu0
        %v1105 = vadd.f32 %v1068, %v1104
        %1106 = vdwg.mxu0
        %1107 = vmatpush.msra.mxu0 0.0
        %1108 = vmatpush.msra.mxu0 0.0
        %1109 = vmatpush.msra.mxu0 0.0
        %1110 = vmatpush.msra.mxu0 0.0
        %1111 = vmatpush.msra.mxu0 0.0
        %1112 = vmatpush.msra.mxu0 0.0
        %1113 = vmatpush.msra.mxu0 0.0
        %1114 = vmatpush.msra.mxu0 0.0
        %1115 = vmatpush.msra.mxu0 0.0
        %1116 = vmatpush.msra.mxu0 0.0
        %1117 = vmatpush.msra.mxu0 0.0
        %1118 = vmatpush.msra.mxu0 0.0
        %v1119 = vand.u32 %v407, 4294901760
        %1120 = vmatpush.msra.mxu0 %v1119
        %v1121 = vand.u32 %v405, 4294901760
        %1122 = vmatpush.msra.mxu0 %v1121
        %v1123 = vand.u32 %v403, 4294901760
        %1124 = vmatpush.msra.mxu0 %v1123
        %v1125 = vand.u32 %v401, 4294901760
        %1126 = vmatpush.msra.mxu0 %v1125
        %v1127 = vand.u32 %v915, 4294901760
        %1128 = vmatmul.f32.gmra.mxu0 %v1127
        %v1129 = vpop.f32.mrf.mxu0
        %v1130 = vadd.f32 %v1101, %v1129
        %v1131 = vand.u32 %v918, 4294901760
        %1132 = vmatmul.f32.gmra.mxu0 %v1131
        %v1133 = vpop.f32.mrf.mxu0
        %v1134 = vadd.f32 %v1105, %v1133
        %1135 = vdwg.mxu0
        %1136 = vmatpush.msra.mxu0 0.0
        %1137 = vmatpush.msra.mxu0 0.0
        %1138 = vmatpush.msra.mxu0 0.0
        %1139 = vmatpush.msra.mxu0 0.0
        %1140 = vmatpush.msra.mxu0 0.0
        %1141 = vmatpush.msra.mxu0 0.0
        %1142 = vmatpush.msra.mxu0 0.0
        %1143 = vmatpush.msra.mxu0 0.0
        %1144 = vmatpush.msra.mxu0 0.0
        %1145 = vmatpush.msra.mxu0 0.0
        %1146 = vmatpush.msra.mxu0 0.0
        %1147 = vmatpush.msra.mxu0 0.0
        %v1148 = vand.u32 %v408, 4294901760
        %1149 = vmatpush.msra.mxu0 %v1148
        %v1150 = vand.u32 %v406, 4294901760
        %1151 = vmatpush.msra.mxu0 %v1150
        %v1152 = vand.u32 %v404, 4294901760
        %1153 = vmatpush.msra.mxu0 %v1152
        %v1154 = vand.u32 %v402, 4294901760
        %1155 = vmatpush.msra.mxu0 %v1154
        %v1156 = vand.u32 %v915, 4294901760
        %v1157 = vsub.f32 %v915, %v1156
        %v1158 = vand.u32 %v1157, 4294901760
        %v1159 = vsub.f32 %v1157, %v1158
        %v1160 = vand.u32 %v1159, 4294901760
        %1161 = vmatmul.f32.gmra.mxu0 %v1160
        %v1162 = vpop.f32.mrf.mxu0
        %v1163 = vadd.f32 0.0, %v1162
        %v1164 = vand.u32 %v918, 4294901760
        %v1165 = vsub.f32 %v918, %v1164
        %v1166 = vand.u32 %v1165, 4294901760
        %v1167 = vsub.f32 %v1165, %v1166
        %v1168 = vand.u32 %v1167, 4294901760
        %1169 = vmatmul.f32.gmra.mxu0 %v1168
        %v1170 = vpop.f32.mrf.mxu0
        %v1171 = vadd.f32 0.0, %v1170
        %1172 = vdwg.mxu0
        %1173 = vmatpush.msra.mxu0 0.0
        %1174 = vmatpush.msra.mxu0 0.0
        %1175 = vmatpush.msra.mxu0 0.0
        %1176 = vmatpush.msra.mxu0 0.0
        %1177 = vmatpush.msra.mxu0 0.0
        %1178 = vmatpush.msra.mxu0 0.0
        %1179 = vmatpush.msra.mxu0 0.0
        %1180 = vmatpush.msra.mxu0 0.0
        %1181 = vmatpush.msra.mxu0 0.0
        %1182 = vmatpush.msra.mxu0 0.0
        %1183 = vmatpush.msra.mxu0 0.0
        %1184 = vmatpush.msra.mxu0 0.0
        %v1185 = vand.u32 %v408, 4294901760
        %v1186 = vsub.f32 %v408, %v1185
        %v1187 = vand.u32 %v1186, 4294901760
        %v1188 = vsub.f32 %v1186, %v1187
        %v1189 = vand.u32 %v1188, 4294901760
        %1190 = vmatpush.msra.mxu0 %v1189
        %v1191 = vand.u32 %v406, 4294901760
        %v1192 = vsub.f32 %v406, %v1191
        %v1193 = vand.u32 %v1192, 4294901760
        %v1194 = vsub.f32 %v1192, %v1193
        %v1195 = vand.u32 %v1194, 4294901760
        %1196 = vmatpush.msra.mxu0 %v1195
        %v1197 = vand.u32 %v404, 4294901760
        %v1198 = vsub.f32 %v404, %v1197
        %v1199 = vand.u32 %v1198, 4294901760
        %v1200 = vsub.f32 %v1198, %v1199
        %v1201 = vand.u32 %v1200, 4294901760
        %1202 = vmatpush.msra.mxu0 %v1201
        %v1203 = vand.u32 %v402, 4294901760
        %v1204 = vsub.f32 %v402, %v1203
        %v1205 = vand.u32 %v1204, 4294901760
        %v1206 = vsub.f32 %v1204, %v1205
        %v1207 = vand.u32 %v1206, 4294901760
        %1208 = vmatpush.msra.mxu0 %v1207
        %v1209 = vand.u32 %v915, 4294901760
        %1210 = vmatmul.f32.gmra.mxu0 %v1209
        %v1211 = vpop.f32.mrf.mxu0
        %v1212 = vadd.f32 %v1163, %v1211
        %v1213 = vand.u32 %v918, 4294901760
        %1214 = vmatmul.f32.gmra.mxu0 %v1213
        %v1215 = vpop.f32.mrf.mxu0
        %v1216 = vadd.f32 %v1171, %v1215
        %1217 = vdwg.mxu0
        %1218 = vmatpush.msra.mxu0 0.0
        %1219 = vmatpush.msra.mxu0 0.0
        %1220 = vmatpush.msra.mxu0 0.0
        %1221 = vmatpush.msra.mxu0 0.0
        %1222 = vmatpush.msra.mxu0 0.0
        %1223 = vmatpush.msra.mxu0 0.0
        %1224 = vmatpush.msra.mxu0 0.0
        %1225 = vmatpush.msra.mxu0 0.0
        %1226 = vmatpush.msra.mxu0 0.0
        %1227 = vmatpush.msra.mxu0 0.0
        %1228 = vmatpush.msra.mxu0 0.0
        %1229 = vmatpush.msra.mxu0 0.0
        %v1230 = vand.u32 %v408, 4294901760
        %v1231 = vsub.f32 %v408, %v1230
        %1232 = vmatpush.msra.mxu0 %v1231
        %v1233 = vand.u32 %v406, 4294901760
        %v1234 = vsub.f32 %v406, %v1233
        %1235 = vmatpush.msra.mxu0 %v1234
        %v1236 = vand.u32 %v404, 4294901760
        %v1237 = vsub.f32 %v404, %v1236
        %1238 = vmatpush.msra.mxu0 %v1237
        %v1239 = vand.u32 %v402, 4294901760
        %v1240 = vsub.f32 %v402, %v1239
        %1241 = vmatpush.msra.mxu0 %v1240
        %v1242 = vand.u32 %v915, 4294901760
        %v1243 = vsub.f32 %v915, %v1242
        %1244 = vmatmul.f32.gmra.mxu0 %v1243
        %v1245 = vpop.f32.mrf.mxu0
        %v1246 = vadd.f32 %v1212, %v1245
        %v1247 = vand.u32 %v918, 4294901760
        %v1248 = vsub.f32 %v918, %v1247
        %1249 = vmatmul.f32.gmra.mxu0 %v1248
        %v1250 = vpop.f32.mrf.mxu0
        %v1251 = vadd.f32 %v1216, %v1250
        %1252 = vdwg.mxu0
        %1253 = vmatpush.msra.mxu0 0.0
        %1254 = vmatpush.msra.mxu0 0.0
        %1255 = vmatpush.msra.mxu0 0.0
        %1256 = vmatpush.msra.mxu0 0.0
        %1257 = vmatpush.msra.mxu0 0.0
        %1258 = vmatpush.msra.mxu0 0.0
        %1259 = vmatpush.msra.mxu0 0.0
        %1260 = vmatpush.msra.mxu0 0.0
        %1261 = vmatpush.msra.mxu0 0.0
        %1262 = vmatpush.msra.mxu0 0.0
        %1263 = vmatpush.msra.mxu0 0.0
        %1264 = vmatpush.msra.mxu0 0.0
        %v1265 = vand.u32 %v408, 4294901760
        %1266 = vmatpush.msra.mxu0 %v1265
        %v1267 = vand.u32 %v406, 4294901760
        %1268 = vmatpush.msra.mxu0 %v1267
        %v1269 = vand.u32 %v404, 4294901760
        %1270 = vmatpush.msra.mxu0 %v1269
        %v1271 = vand.u32 %v402, 4294901760
        %1272 = vmatpush.msra.mxu0 %v1271
        %v1273 = vand.u32 %v915, 4294901760
        %v1274 = vsub.f32 %v915, %v1273
        %v1275 = vand.u32 %v1274, 4294901760
        %1276 = vmatmul.f32.gmra.mxu0 %v1275
        %v1277 = vpop.f32.mrf.mxu0
        %v1278 = vadd.f32 %v1246, %v1277
        %v1279 = vand.u32 %v918, 4294901760
        %v1280 = vsub.f32 %v918, %v1279
        %v1281 = vand.u32 %v1280, 4294901760
        %1282 = vmatmul.f32.gmra.mxu0 %v1281
        %v1283 = vpop.f32.mrf.mxu0
        %v1284 = vadd.f32 %v1251, %v1283
        %1285 = vdwg.mxu0
        %1286 = vmatpush.msra.mxu0 0.0
        %1287 = vmatpush.msra.mxu0 0.0
        %1288 = vmatpush.msra.mxu0 0.0
        %1289 = vmatpush.msra.mxu0 0.0
        %1290 = vmatpush.msra.mxu0 0.0
        %1291 = vmatpush.msra.mxu0 0.0
        %1292 = vmatpush.msra.mxu0 0.0
        %1293 = vmatpush.msra.mxu0 0.0
        %1294 = vmatpush.msra.mxu0 0.0
        %1295 = vmatpush.msra.mxu0 0.0
        %1296 = vmatpush.msra.mxu0 0.0
        %1297 = vmatpush.msra.mxu0 0.0
        %v1298 = vand.u32 %v408, 4294901760
        %v1299 = vsub.f32 %v408, %v1298
        %v1300 = vand.u32 %v1299, 4294901760
        %1301 = vmatpush.msra.mxu0 %v1300
        %v1302 = vand.u32 %v406, 4294901760
        %v1303 = vsub.f32 %v406, %v1302
        %v1304 = vand.u32 %v1303, 4294901760
        %1305 = vmatpush.msra.mxu0 %v1304
        %v1306 = vand.u32 %v404, 4294901760
        %v1307 = vsub.f32 %v404, %v1306
        %v1308 = vand.u32 %v1307, 4294901760
        %1309 = vmatpush.msra.mxu0 %v1308
        %v1310 = vand.u32 %v402, 4294901760
        %v1311 = vsub.f32 %v402, %v1310
        %v1312 = vand.u32 %v1311, 4294901760
        %1313 = vmatpush.msra.mxu0 %v1312
        %v1314 = vand.u32 %v915, 4294901760
        %1315 = vmatmul.f32.gmra.mxu0 %v1314
        %v1316 = vpop.f32.mrf.mxu0
        %v1317 = vadd.f32 %v1278, %v1316
        %v1318 = vand.u32 %v918, 4294901760
        %1319 = vmatmul.f32.gmra.mxu0 %v1318
        %v1320 = vpop.f32.mrf.mxu0
        %v1321 = vadd.f32 %v1284, %v1320
        %1322 = vdwg.mxu0
        %1323 = vmatpush.msra.mxu0 0.0
        %1324 = vmatpush.msra.mxu0 0.0
        %1325 = vmatpush.msra.mxu0 0.0
        %1326 = vmatpush.msra.mxu0 0.0
        %1327 = vmatpush.msra.mxu0 0.0
        %1328 = vmatpush.msra.mxu0 0.0
        %1329 = vmatpush.msra.mxu0 0.0
        %1330 = vmatpush.msra.mxu0 0.0
        %1331 = vmatpush.msra.mxu0 0.0
        %1332 = vmatpush.msra.mxu0 0.0
        %1333 = vmatpush.msra.mxu0 0.0
        %1334 = vmatpush.msra.mxu0 0.0
        %v1335 = vand.u32 %v408, 4294901760
        %1336 = vmatpush.msra.mxu0 %v1335
        %v1337 = vand.u32 %v406, 4294901760
        %1338 = vmatpush.msra.mxu0 %v1337
        %v1339 = vand.u32 %v404, 4294901760
        %1340 = vmatpush.msra.mxu0 %v1339
        %v1341 = vand.u32 %v402, 4294901760
        %1342 = vmatpush.msra.mxu0 %v1341
        %v1343 = vand.u32 %v915, 4294901760
        %1344 = vmatmul.f32.gmra.mxu0 %v1343
        %v1345 = vpop.f32.mrf.mxu0
        %v1346 = vadd.f32 %v1317, %v1345
        %v1347 = vand.u32 %v918, 4294901760
        %1348 = vmatmul.f32.gmra.mxu0 %v1347
        %v1349 = vpop.f32.mrf.mxu0
        %v1350 = vadd.f32 %v1321, %v1349
        %1351 = vdwg.mxu0
        %v1352 = vmul.f32 %v1130, %v1130
        %v1353 = vmul.f32 %v1134, %v1134
        %v1354 = vmul.f32 %v1346, %v1346
        %v1355 = vmul.f32 %v1350, %v1350
        %v1356 = vadd.f32 %v1352, %v1354
        %v1357 = vadd.f32 %v1353, %v1355
        %vm1358 = vcmp.gt.f32.partialorder %v1356, 0.0
        %vm1359 = vcmp.gt.f32.partialorder %v1357, 0.0
        %v1360 = vrsqrt.pop %v1356
        %v1361 = vmul.f32 %v1360, %v1356
        %v1362 = vmul.f32 %v1361, %v1360
        %v1363 = vmul.f32 0.5, %v1362
        %v1364 = vsub.f32 1.5, %v1363
        %v1365 = vmul.f32 %v1360, %v1364
        %v1366 = vmul.f32 %v1356, %v1365
        %vm1367 = vcmp.eq.f32.partialorder %v1356, inf
        %v1368 = vsel %vm1367, %v1356, %v1366
        %vm1369 = vcmp.eq.f32.partialorder %v1356, 0.0
        %v1370 = vand.u32 %v1356, 2147483648
        %v1371 = vsel %vm1369, %v1370, %v1368
        %v1372 = vrsqrt.pop %v1357
        %v1373 = vmul.f32 %v1372, %v1357
        %v1374 = vmul.f32 %v1373, %v1372
        %v1375 = vmul.f32 0.5, %v1374
        %v1376 = vsub.f32 1.5, %v1375
        %v1377 = vmul.f32 %v1372, %v1376
        %v1378 = vmul.f32 %v1357, %v1377
        %vm1379 = vcmp.eq.f32.partialorder %v1357, inf
        %v1380 = vsel %vm1379, %v1357, %v1378
        %vm1381 = vcmp.eq.f32.partialorder %v1357, 0.0
        %v1382 = vand.u32 %v1357, 2147483648
        %v1383 = vsel %vm1381, %v1382, %v1380
        %v1384 = vrsqrt.pop %v1371
        %v1385 = vmul.f32 %v1384, %v1371
        %v1386 = vmul.f32 %v1385, %v1384
        %v1387 = vmul.f32 0.5, %v1386
        %v1388 = vsub.f32 1.5, %v1387
        %v1389 = vmul.f32 %v1384, %v1388
        %vm1390 = vweird.f32 %v1371
        %vm1391 = vweird.f32 %v1384
        %vm1392 = vmor %vm1390, %vm1391
        %v1393 = vsel %vm1392, %v1384, %v1389
        %v1394 = vrsqrt.pop %v1383
        %v1395 = vmul.f32 %v1394, %v1383
        %v1396 = vmul.f32 %v1395, %v1394
        %v1397 = vmul.f32 0.5, %v1396
        %v1398 = vsub.f32 1.5, %v1397
        %v1399 = vmul.f32 %v1394, %v1398
        %vm1400 = vweird.f32 %v1383
        %vm1401 = vweird.f32 %v1394
        %vm1402 = vmor %vm1400, %vm1401
        %v1403 = vsel %vm1402, %v1394, %v1399
        %v1404 = vsel %vm1358, %v1393, 0.0
        %v1405 = vsel %vm1359, %v1403, 0.0
        %v1406 = vmul.f32 %v1130, %v1404
        %v1407 = vmul.f32 %v1134, %v1405
        %v1408 = vmul.f32 %v1346, %v1404
        %v1409 = vmul.f32 %v1350, %v1405
        %s1410 = sld [smem:[#allocation2]]
        %v1411 = vstv %s1410
        %v1412 = vmul.f32 %v1406, %v1411
        %v1413 = vmul.f32 %v1407, %v1411
        %s1414 = sld [smem:[#allocation2 + $0x10]]
        %v1415 = vstv %s1414
        %v1416 = vmul.f32 %v1408, %v1415
        %v1417 = vmul.f32 %v1409, %v1415
        %v1418 = vadd.f32 %v1412, %v1416
        %v1419 = vadd.f32 %v1413, %v1417
        %s1420 = sld [smem:[#allocation4]]
        %v1421 = vstv %s1420
        %v1422 = vadd.f32 %v1418, %v1421
        %v1423 = vadd.f32 %v1419, %v1421
        %v1424 = vmax.f32 %v1422, 0.0
        %v1425 = vmax.f32 %v1423, 0.0
        %s1426 = sld [smem:[#allocation6]]
        %v1427 = vstv %s1426
        %v1428 = vmul.f32 %v1424, %v1427
        %v1429 = vmul.f32 %v1425, %v1427
        %v1430 = vadd.f32 %v1428, 0.0
        %v1431 = vadd.f32 %v1429, 0.0
        %s1432 = sld [smem:[#allocation6 + $0x1]]
        %v1433 = vstv %s1432
        %v1434 = vmul.f32 %v1424, %v1433
        %v1435 = vmul.f32 %v1425, %v1433
        %v1436 = vadd.f32 %v1434, 0.0
        %v1437 = vadd.f32 %v1435, 0.0
        %s1438 = sld [smem:[#allocation2 + $0x1]]
        %v1439 = vstv %s1438
        %v1440 = vmul.f32 %v1406, %v1439
        %v1441 = vmul.f32 %v1407, %v1439
        %s1442 = sld [smem:[#allocation2 + $0x11]]
        %v1443 = vstv %s1442
        %v1444 = vmul.f32 %v1408, %v1443
        %v1445 = vmul.f32 %v1409, %v1443
        %v1446 = vadd.f32 %v1440, %v1444
        %v1447 = vadd.f32 %v1441, %v1445
        %s1448 = sld [smem:[#allocation4 + $0x1]]
        %v1449 = vstv %s1448
        %v1450 = vadd.f32 %v1446, %v1449
        %v1451 = vadd.f32 %v1447, %v1449
        %v1452 = vmax.f32 %v1450, 0.0
        %v1453 = vmax.f32 %v1451, 0.0
        %s1454 = sld [smem:[#allocation6 + $0x2]]
        %v1455 = vstv %s1454
        %v1456 = vmul.f32 %v1452, %v1455
        %v1457 = vmul.f32 %v1453, %v1455
        %v1458 = vadd.f32 %v1430, %v1456
        %v1459 = vadd.f32 %v1431, %v1457
        %s1460 = sld [smem:[#allocation6 + $0x3]]
        %v1461 = vstv %s1460
        %v1462 = vmul.f32 %v1452, %v1461
        %v1463 = vmul.f32 %v1453, %v1461
        %v1464 = vadd.f32 %v1436, %v1462
        %v1465 = vadd.f32 %v1437, %v1463
        %s1466 = sld [smem:[#allocation2 + $0x2]]
        %v1467 = vstv %s1466
        %v1468 = vmul.f32 %v1406, %v1467
        %v1469 = vmul.f32 %v1407, %v1467
        %s1470 = sld [smem:[#allocation2 + $0x12]]
        %v1471 = vstv %s1470
        %v1472 = vmul.f32 %v1408, %v1471
        %v1473 = vmul.f32 %v1409, %v1471
        %v1474 = vadd.f32 %v1468, %v1472
        %v1475 = vadd.f32 %v1469, %v1473
        %s1476 = sld [smem:[#allocation4 + $0x2]]
        %v1477 = vstv %s1476
        %v1478 = vadd.f32 %v1474, %v1477
        %v1479 = vadd.f32 %v1475, %v1477
        %v1480 = vmax.f32 %v1478, 0.0
        %v1481 = vmax.f32 %v1479, 0.0
        %s1482 = sld [smem:[#allocation6 + $0x4]]
        %v1483 = vstv %s1482
        %v1484 = vmul.f32 %v1480, %v1483
        %v1485 = vmul.f32 %v1481, %v1483
        %v1486 = vadd.f32 %v1458, %v1484
        %v1487 = vadd.f32 %v1459, %v1485
        %s1488 = sld [smem:[#allocation6 + $0x5]]
        %v1489 = vstv %s1488
        %v1490 = vmul.f32 %v1480, %v1489
        %v1491 = vmul.f32 %v1481, %v1489
        %v1492 = vadd.f32 %v1464, %v1490
        %v1493 = vadd.f32 %v1465, %v1491
        %s1494 = sld [smem:[#allocation2 + $0x3]]
        %v1495 = vstv %s1494
        %v1496 = vmul.f32 %v1406, %v1495
        %v1497 = vmul.f32 %v1407, %v1495
        %s1498 = sld [smem:[#allocation2 + $0x13]]
        %v1499 = vstv %s1498
        %v1500 = vmul.f32 %v1408, %v1499
        %v1501 = vmul.f32 %v1409, %v1499
        %v1502 = vadd.f32 %v1496, %v1500
        %v1503 = vadd.f32 %v1497, %v1501
        %s1504 = sld [smem:[#allocation4 + $0x3]]
        %v1505 = vstv %s1504
        %v1506 = vadd.f32 %v1502, %v1505
        %v1507 = vadd.f32 %v1503, %v1505
        %v1508 = vmax.f32 %v1506, 0.0
        %v1509 = vmax.f32 %v1507, 0.0
        %s1510 = sld [smem:[#allocation6 + $0x6]]
        %v1511 = vstv %s1510
        %v1512 = vmul.f32 %v1508, %v1511
        %v1513 = vmul.f32 %v1509, %v1511
        %v1514 = vadd.f32 %v1486, %v1512
        %v1515 = vadd.f32 %v1487, %v1513
        %s1516 = sld [smem:[#allocation6 + $0x7]]
        %v1517 = vstv %s1516
        %v1518 = vmul.f32 %v1508, %v1517
        %v1519 = vmul.f32 %v1509, %v1517
        %v1520 = vadd.f32 %v1492, %v1518
        %v1521 = vadd.f32 %v1493, %v1519
        %s1522 = sld [smem:[#allocation2 + $0x4]]
        %v1523 = vstv %s1522
        %v1524 = vmul.f32 %v1406, %v1523
        %v1525 = vmul.f32 %v1407, %v1523
        %s1526 = sld [smem:[#allocation2 + $0x14]]
        %v1527 = vstv %s1526
        %v1528 = vmul.f32 %v1408, %v1527
        %v1529 = vmul.f32 %v1409, %v1527
        %v1530 = vadd.f32 %v1524, %v1528
        %v1531 = vadd.f32 %v1525, %v1529
        %s1532 = sld [smem:[#allocation4 + $0x4]]
        %v1533 = vstv %s1532
        %v1534 = vadd.f32 %v1530, %v1533
        %v1535 = vadd.f32 %v1531, %v1533
        %v1536 = vmax.f32 %v1534, 0.0
        %v1537 = vmax.f32 %v1535, 0.0
        %s1538 = sld [smem:[#allocation6 + $0x8]]
        %v1539 = vstv %s1538
        %v1540 = vmul.f32 %v1536, %v1539
        %v1541 = vmul.f32 %v1537, %v1539
        %v1542 = vadd.f32 %v1514, %v1540
        %v1543 = vadd.f32 %v1515, %v1541
        %s1544 = sld [smem:[#allocation6 + $0x9]]
        %v1545 = vstv %s1544
        %v1546 = vmul.f32 %v1536, %v1545
        %v1547 = vmul.f32 %v1537, %v1545
        %v1548 = vadd.f32 %v1520, %v1546
        %v1549 = vadd.f32 %v1521, %v1547
        %s1550 = sld [smem:[#allocation2 + $0x5]]
        %v1551 = vstv %s1550
        %v1552 = vmul.f32 %v1406, %v1551
        %v1553 = vmul.f32 %v1407, %v1551
        %s1554 = sld [smem:[#allocation2 + $0x15]]
        %v1555 = vstv %s1554
        %v1556 = vmul.f32 %v1408, %v1555
        %v1557 = vmul.f32 %v1409, %v1555
        %v1558 = vadd.f32 %v1552, %v1556
        %v1559 = vadd.f32 %v1553, %v1557
        %s1560 = sld [smem:[#allocation4 + $0x5]]
        %v1561 = vstv %s1560
        %v1562 = vadd.f32 %v1558, %v1561
        %v1563 = vadd.f32 %v1559, %v1561
        %v1564 = vmax.f32 %v1562, 0.0
        %v1565 = vmax.f32 %v1563, 0.0
        %s1566 = sld [smem:[#allocation6 + $0xa]]
        %v1567 = vstv %s1566
        %v1568 = vmul.f32 %v1564, %v1567
        %v1569 = vmul.f32 %v1565, %v1567
        %v1570 = vadd.f32 %v1542, %v1568
        %v1571 = vadd.f32 %v1543, %v1569
        %s1572 = sld [smem:[#allocation6 + $0xb]]
        %v1573 = vstv %s1572
        %v1574 = vmul.f32 %v1564, %v1573
        %v1575 = vmul.f32 %v1565, %v1573
        %v1576 = vadd.f32 %v1548, %v1574
        %v1577 = vadd.f32 %v1549, %v1575
        %s1578 = sld [smem:[#allocation2 + $0x6]]
        %v1579 = vstv %s1578
        %v1580 = vmul.f32 %v1406, %v1579
        %v1581 = vmul.f32 %v1407, %v1579
        %s1582 = sld [smem:[#allocation2 + $0x16]]
        %v1583 = vstv %s1582
        %v1584 = vmul.f32 %v1408, %v1583
        %v1585 = vmul.f32 %v1409, %v1583
        %v1586 = vadd.f32 %v1580, %v1584
        %v1587 = vadd.f32 %v1581, %v1585
        %s1588 = sld [smem:[#allocation4 + $0x6]]
        %v1589 = vstv %s1588
        %v1590 = vadd.f32 %v1586, %v1589
        %v1591 = vadd.f32 %v1587, %v1589
        %v1592 = vmax.f32 %v1590, 0.0
        %v1593 = vmax.f32 %v1591, 0.0
        %s1594 = sld [smem:[#allocation6 + $0xc]]
        %v1595 = vstv %s1594
        %v1596 = vmul.f32 %v1592, %v1595
        %v1597 = vmul.f32 %v1593, %v1595
        %v1598 = vadd.f32 %v1570, %v1596
        %v1599 = vadd.f32 %v1571, %v1597
        %s1600 = sld [smem:[#allocation6 + $0xd]]
        %v1601 = vstv %s1600
        %v1602 = vmul.f32 %v1592, %v1601
        %v1603 = vmul.f32 %v1593, %v1601
        %v1604 = vadd.f32 %v1576, %v1602
        %v1605 = vadd.f32 %v1577, %v1603
        %s1606 = sld [smem:[#allocation2 + $0x7]]
        %v1607 = vstv %s1606
        %v1608 = vmul.f32 %v1406, %v1607
        %v1609 = vmul.f32 %v1407, %v1607
        %s1610 = sld [smem:[#allocation2 + $0x17]]
        %v1611 = vstv %s1610
        %v1612 = vmul.f32 %v1408, %v1611
        %v1613 = vmul.f32 %v1409, %v1611
        %v1614 = vadd.f32 %v1608, %v1612
        %v1615 = vadd.f32 %v1609, %v1613
        %s1616 = sld [smem:[#allocation4 + $0x7]]
        %v1617 = vstv %s1616
        %v1618 = vadd.f32 %v1614, %v1617
        %v1619 = vadd.f32 %v1615, %v1617
        %v1620 = vmax.f32 %v1618, 0.0
        %v1621 = vmax.f32 %v1619, 0.0
        %s1622 = sld [smem:[#allocation6 + $0xe]]
        %v1623 = vstv %s1622
        %v1624 = vmul.f32 %v1620, %v1623
        %v1625 = vmul.f32 %v1621, %v1623
        %v1626 = vadd.f32 %v1598, %v1624
        %v1627 = vadd.f32 %v1599, %v1625
        %s1628 = sld [smem:[#allocation6 + $0xf]]
        %v1629 = vstv %s1628
        %v1630 = vmul.f32 %v1620, %v1629
        %v1631 = vmul.f32 %v1621, %v1629
        %v1632 = vadd.f32 %v1604, %v1630
        %v1633 = vadd.f32 %v1605, %v1631
        %s1634 = sld [smem:[#allocation2 + $0x8]]
        %v1635 = vstv %s1634
        %v1636 = vmul.f32 %v1406, %v1635
        %v1637 = vmul.f32 %v1407, %v1635
        %s1638 = sld [smem:[#allocation2 + $0x18]]
        %v1639 = vstv %s1638
        %v1640 = vmul.f32 %v1408, %v1639
        %v1641 = vmul.f32 %v1409, %v1639
        %v1642 = vadd.f32 %v1636, %v1640
        %v1643 = vadd.f32 %v1637, %v1641
        %s1644 = sld [smem:[#allocation4 + $0x8]]
        %v1645 = vstv %s1644
        %v1646 = vadd.f32 %v1642, %v1645
        %v1647 = vadd.f32 %v1643, %v1645
        %v1648 = vmax.f32 %v1646, 0.0
        %v1649 = vmax.f32 %v1647, 0.0
        %s1650 = sld [smem:[#allocation6 + $0x10]]
        %v1651 = vstv %s1650
        %v1652 = vmul.f32 %v1648, %v1651
        %v1653 = vmul.f32 %v1649, %v1651
        %v1654 = vadd.f32 %v1626, %v1652
        %v1655 = vadd.f32 %v1627, %v1653
        %s1656 = sld [smem:[#allocation6 + $0x11]]
        %v1657 = vstv %s1656
        %v1658 = vmul.f32 %v1648, %v1657
        %v1659 = vmul.f32 %v1649, %v1657
        %v1660 = vadd.f32 %v1632, %v1658
        %v1661 = vadd.f32 %v1633, %v1659
        %s1662 = sld [smem:[#allocation2 + $0x9]]
        %v1663 = vstv %s1662
        %v1664 = vmul.f32 %v1406, %v1663
        %v1665 = vmul.f32 %v1407, %v1663
        %s1666 = sld [smem:[#allocation2 + $0x19]]
        %v1667 = vstv %s1666
        %v1668 = vmul.f32 %v1408, %v1667
        %v1669 = vmul.f32 %v1409, %v1667
        %v1670 = vadd.f32 %v1664, %v1668
        %v1671 = vadd.f32 %v1665, %v1669
        %s1672 = sld [smem:[#allocation4 + $0x9]]
        %v1673 = vstv %s1672
        %v1674 = vadd.f32 %v1670, %v1673
        %v1675 = vadd.f32 %v1671, %v1673
        %v1676 = vmax.f32 %v1674, 0.0
        %v1677 = vmax.f32 %v1675, 0.0
        %s1678 = sld [smem:[#allocation6 + $0x12]]
        %v1679 = vstv %s1678
        %v1680 = vmul.f32 %v1676, %v1679
        %v1681 = vmul.f32 %v1677, %v1679
        %v1682 = vadd.f32 %v1654, %v1680
        %v1683 = vadd.f32 %v1655, %v1681
        %s1684 = sld [smem:[#allocation6 + $0x13]]
        %v1685 = vstv %s1684
        %v1686 = vmul.f32 %v1676, %v1685
        %v1687 = vmul.f32 %v1677, %v1685
        %v1688 = vadd.f32 %v1660, %v1686
        %v1689 = vadd.f32 %v1661, %v1687
        %s1690 = sld [smem:[#allocation2 + $0xa]]
        %v1691 = vstv %s1690
        %v1692 = vmul.f32 %v1406, %v1691
        %v1693 = vmul.f32 %v1407, %v1691
        %s1694 = sld [smem:[#allocation2 + $0x1a]]
        %v1695 = vstv %s1694
        %v1696 = vmul.f32 %v1408, %v1695
        %v1697 = vmul.f32 %v1409, %v1695
        %v1698 = vadd.f32 %v1692, %v1696
        %v1699 = vadd.f32 %v1693, %v1697
        %s1700 = sld [smem:[#allocation4 + $0xa]]
        %v1701 = vstv %s1700
        %v1702 = vadd.f32 %v1698, %v1701
        %v1703 = vadd.f32 %v1699, %v1701
        %v1704 = vmax.f32 %v1702, 0.0
        %v1705 = vmax.f32 %v1703, 0.0
        %s1706 = sld [smem:[#allocation6 + $0x14]]
        %v1707 = vstv %s1706
        %v1708 = vmul.f32 %v1704, %v1707
        %v1709 = vmul.f32 %v1705, %v1707
        %v1710 = vadd.f32 %v1682, %v1708
        %v1711 = vadd.f32 %v1683, %v1709
        %s1712 = sld [smem:[#allocation6 + $0x15]]
        %v1713 = vstv %s1712
        %v1714 = vmul.f32 %v1704, %v1713
        %v1715 = vmul.f32 %v1705, %v1713
        %v1716 = vadd.f32 %v1688, %v1714
        %v1717 = vadd.f32 %v1689, %v1715
        %s1718 = sld [smem:[#allocation2 + $0xb]]
        %v1719 = vstv %s1718
        %v1720 = vmul.f32 %v1406, %v1719
        %v1721 = vmul.f32 %v1407, %v1719
        %s1722 = sld [smem:[#allocation2 + $0x1b]]
        %v1723 = vstv %s1722
        %v1724 = vmul.f32 %v1408, %v1723
        %v1725 = vmul.f32 %v1409, %v1723
        %v1726 = vadd.f32 %v1720, %v1724
        %v1727 = vadd.f32 %v1721, %v1725
        %s1728 = sld [smem:[#allocation4 + $0xb]]
        %v1729 = vstv %s1728
        %v1730 = vadd.f32 %v1726, %v1729
        %v1731 = vadd.f32 %v1727, %v1729
        %v1732 = vmax.f32 %v1730, 0.0
        %v1733 = vmax.f32 %v1731, 0.0
        %s1734 = sld [smem:[#allocation6 + $0x16]]
        %v1735 = vstv %s1734
        %v1736 = vmul.f32 %v1732, %v1735
        %v1737 = vmul.f32 %v1733, %v1735
        %v1738 = vadd.f32 %v1710, %v1736
        %v1739 = vadd.f32 %v1711, %v1737
        %s1740 = sld [smem:[#allocation6 + $0x17]]
        %v1741 = vstv %s1740
        %v1742 = vmul.f32 %v1732, %v1741
        %v1743 = vmul.f32 %v1733, %v1741
        %v1744 = vadd.f32 %v1716, %v1742
        %v1745 = vadd.f32 %v1717, %v1743
        %s1746 = sld [smem:[#allocation2 + $0xc]]
        %v1747 = vstv %s1746
        %v1748 = vmul.f32 %v1406, %v1747
        %v1749 = vmul.f32 %v1407, %v1747
        %s1750 = sld [smem:[#allocation2 + $0x1c]]
        %v1751 = vstv %s1750
        %v1752 = vmul.f32 %v1408, %v1751
        %v1753 = vmul.f32 %v1409, %v1751
        %v1754 = vadd.f32 %v1748, %v1752
        %v1755 = vadd.f32 %v1749, %v1753
        %s1756 = sld [smem:[#allocation4 + $0xc]]
        %v1757 = vstv %s1756
        %v1758 = vadd.f32 %v1754, %v1757
        %v1759 = vadd.f32 %v1755, %v1757
        %v1760 = vmax.f32 %v1758, 0.0
        %v1761 = vmax.f32 %v1759, 0.0
        %s1762 = sld [smem:[#allocation6 + $0x18]]
        %v1763 = vstv %s1762
        %v1764 = vmul.f32 %v1760, %v1763
        %v1765 = vmul.f32 %v1761, %v1763
        %v1766 = vadd.f32 %v1738, %v1764
        %v1767 = vadd.f32 %v1739, %v1765
        %s1768 = sld [smem:[#allocation6 + $0x19]]
        %v1769 = vstv %s1768
        %v1770 = vmul.f32 %v1760, %v1769
        %v1771 = vmul.f32 %v1761, %v1769
        %v1772 = vadd.f32 %v1744, %v1770
        %v1773 = vadd.f32 %v1745, %v1771
        %s1774 = sld [smem:[#allocation2 + $0xd]]
        %v1775 = vstv %s1774
        %v1776 = vmul.f32 %v1406, %v1775
        %v1777 = vmul.f32 %v1407, %v1775
        %s1778 = sld [smem:[#allocation2 + $0x1d]]
        %v1779 = vstv %s1778
        %v1780 = vmul.f32 %v1408, %v1779
        %v1781 = vmul.f32 %v1409, %v1779
        %v1782 = vadd.f32 %v1776, %v1780
        %v1783 = vadd.f32 %v1777, %v1781
        %s1784 = sld [smem:[#allocation4 + $0xd]]
        %v1785 = vstv %s1784
        %v1786 = vadd.f32 %v1782, %v1785
        %v1787 = vadd.f32 %v1783, %v1785
        %v1788 = vmax.f32 %v1786, 0.0
        %v1789 = vmax.f32 %v1787, 0.0
        %s1790 = sld [smem:[#allocation6 + $0x1a]]
        %v1791 = vstv %s1790
        %v1792 = vmul.f32 %v1788, %v1791
        %v1793 = vmul.f32 %v1789, %v1791
        %v1794 = vadd.f32 %v1766, %v1792
        %v1795 = vadd.f32 %v1767, %v1793
        %s1796 = sld [smem:[#allocation6 + $0x1b]]
        %v1797 = vstv %s1796
        %v1798 = vmul.f32 %v1788, %v1797
        %v1799 = vmul.f32 %v1789, %v1797
        %v1800 = vadd.f32 %v1772, %v1798
        %v1801 = vadd.f32 %v1773, %v1799
        %s1802 = sld [smem:[#allocation2 + $0xe]]
        %v1803 = vstv %s1802
        %v1804 = vmul.f32 %v1406, %v1803
        %v1805 = vmul.f32 %v1407, %v1803
        %s1806 = sld [smem:[#allocation2 + $0x1e]]
        %v1807 = vstv %s1806
        %v1808 = vmul.f32 %v1408, %v1807
        %v1809 = vmul.f32 %v1409, %v1807
        %v1810 = vadd.f32 %v1804, %v1808
        %v1811 = vadd.f32 %v1805, %v1809
        %s1812 = sld [smem:[#allocation4 + $0xe]]
        %v1813 = vstv %s1812
        %v1814 = vadd.f32 %v1810, %v1813
        %v1815 = vadd.f32 %v1811, %v1813
        %v1816 = vmax.f32 %v1814, 0.0
        %v1817 = vmax.f32 %v1815, 0.0
        %s1818 = sld [smem:[#allocation6 + $0x1c]]
        %v1819 = vstv %s1818
        %v1820 = vmul.f32 %v1816, %v1819
        %v1821 = vmul.f32 %v1817, %v1819
        %v1822 = vadd.f32 %v1794, %v1820
        %v1823 = vadd.f32 %v1795, %v1821
        %s1824 = sld [smem:[#allocation6 + $0x1d]]
        %v1825 = vstv %s1824
        %v1826 = vmul.f32 %v1816, %v1825
        %v1827 = vmul.f32 %v1817, %v1825
        %v1828 = vadd.f32 %v1800, %v1826
        %v1829 = vadd.f32 %v1801, %v1827
        %s1830 = sld [smem:[#allocation2 + $0xf]]
        %v1831 = vstv %s1830
        %v1832 = vmul.f32 %v1406, %v1831
        %v1833 = vmul.f32 %v1407, %v1831
        %s1834 = sld [smem:[#allocation2 + $0x1f]]
        %v1835 = vstv %s1834
        %v1836 = vmul.f32 %v1408, %v1835
        %v1837 = vmul.f32 %v1409, %v1835
        %v1838 = vadd.f32 %v1832, %v1836
        %v1839 = vadd.f32 %v1833, %v1837
        %s1840 = sld [smem:[#allocation4 + $0xf]]
        %v1841 = vstv %s1840
        %v1842 = vadd.f32 %v1838, %v1841
        %v1843 = vadd.f32 %v1839, %v1841
        %v1844 = vmax.f32 %v1842, 0.0
        %v1845 = vmax.f32 %v1843, 0.0
        %s1846 = sld [smem:[#allocation6 + $0x1e]]
        %v1847 = vstv %s1846
        %v1848 = vmul.f32 %v1844, %v1847
        %v1849 = vmul.f32 %v1845, %v1847
        %v1850 = vadd.f32 %v1822, %v1848
        %v1851 = vadd.f32 %v1823, %v1849
        %s1852 = sld [smem:[#allocation6 + $0x1f]]
        %v1853 = vstv %s1852
        %v1854 = vmul.f32 %v1844, %v1853
        %v1855 = vmul.f32 %v1845, %v1853
        %v1856 = vadd.f32 %v1828, %v1854
        %v1857 = vadd.f32 %v1829, %v1855
        %s1858 = sld [smem:[#allocation7]]
        %v1859 = vstv %s1858
        %v1860 = vadd.f32 %v1850, %v1859
        %v1861 = vadd.f32 %v1851, %v1859
        %1862 = vst [vmem:[%s399] sm:$0xff] %v1860
        %1863 = vst [vmem:[%s399 + $0x10] sm:$0xff] %v1861
        %s1864 = sld [smem:[#allocation7 + $0x1]]
        %v1865 = vstv %s1864
        %v1866 = vadd.f32 %v1856, %v1865
        %v1867 = vadd.f32 %v1857, %v1865
        %1868 = vst [vmem:[%s399 + $0x8] sm:$0xff] %v1866
        %1869 = vst [vmem:[%s399 + $0x18] sm:$0xff] %v1867
        %s1870 = smul.u32 2, %s23
        %p1871 = scmp.lt.s32.totalorder %s1870, 3
        %s1872 = scalar_select %p1871, %s1870, 3
        %s1873 = smul.addr %s1872, 2
        %s1874 = smul.addr %s1873, 8
        %s1875 = scalar_lea.vmem %s7, %s1874
        %s1876 = smul.u32 2, %s23
        %p1877 = scmp.lt.s32.totalorder %s1876, 3
        %s1878 = scalar_select %p1877, %s1876, 3
        %s1879 = smul.addr %s1878, 2
        %s1880 = smul.addr %s1879, 8
        %s1881 = scalar_lea.vmem %s8, %s1880
        // Predicated region
        $region65: #{_lambda_.1} parent=47 // pred_check
          %p1882 = pneg %p198
        $region66: #{_lambda_.1} parent=47 // pred_check_branch
          %1884 = sbr.rel (%p1882) target = $region68
        $region67: #{_lambda_.1} parent=47 // pred_region
          %s1885 = smul.u32 2, %s23
        $region68: #{_lambda_.1} parent=47 // pred_fallthru
          _
        // Predicated region
        $region69: #{_lambda_.1} parent=47 // pred_check
          %p1886 = pneg %p224
        $region70: #{_lambda_.1} parent=47 // pred_check_branch
          %1888 = sbr.rel (%p1886) target = $region72
        $region71: #{_lambda_.1} parent=47 // pred_region
          %s1889 = smul.u32 2, %s23
        $region72: #{_lambda_.1} parent=47 // pred_fallthru
          _
      $region48: #{_lambda_.1} parent=5 // pred_fallthru
        _
      %p1890 = scmp.le.s32.totalorder 2, %s18
      // Predicated region
      $region73: #{_lambda_.1} parent=5 // pred_check
        %p1891 = pneg %p1890
      $region74: #{_lambda_.1} parent=5 // pred_check_branch
        %1893 = sbr.rel (%p1891) target = $region76
      $region75: #{_lambda_.1} parent=5 // pred_region
        %s1894 = ssub.s32 %s18, 2
        // Predicated region
        $region77: #{_lambda_.1} parent=75 // pred_check
          %p1895 = pneg %p204
        $region78: #{_lambda_.1} parent=75 // pred_check_branch
          %1897 = sbr.rel (%p1895) target = $region80
        $region79: #{_lambda_.1} parent=75 // pred_region
          %s1898 = smul.u32 2, %s24
          %p1899 = scmp.lt.s32.totalorder %s1898, 3
          %s1900 = scalar_select %p1899, %s1898, 3
          %s1901 = smul.addr %s1900, 2
          %s1902 = smul.addr %s1901, 8
          %s1903 = scalar_lea.vmem %s7, %s1902
        $region80: #{_lambda_.1} parent=75 // pred_fallthru
          _
        // Predicated region
        $region81: #{_lambda_.1} parent=75 // pred_check
          %p1904 = pneg %p230
        $region82: #{_lambda_.1} parent=75 // pred_check_branch
          %1906 = sbr.rel (%p1904) target = $region84
        $region83: #{_lambda_.1} parent=75 // pred_region
          %s1907 = smul.u32 2, %s24
          %p1908 = scmp.lt.s32.totalorder %s1907, 3
          %s1909 = scalar_select %p1908, %s1907, 3
          %s1910 = smul.addr %s1909, 2
          %s1911 = smul.addr %s1910, 8
          %s1912 = scalar_lea.vmem %s8, %s1911
        $region84: #{_lambda_.1} parent=75 // pred_fallthru
          _
      $region76: #{_lambda_.1} parent=5 // pred_fallthru
        _
    $region6: #{_lambda_.1} parent=1 // loop_footer
      %s22 = sadd.s32 1, %s18
    $region7: #{_lambda_.1} parent=1 // loop_footer_branch
      %17 = sbr.rel target = $region3
    $region8: #{_lambda_.1} parent=1 // loop_exit
      _
    %1913 = vsyncpa [#allocation3], 1
    %s1914 = scalar_lea.sflag [#allocation3], 1
    %1915 = vsyncpa %s1914, 1
    %1916 = vsyncpa [#allocation5], 1
    %1917 = vsyncpa [#allocation8], 1

</llo_original>
